<compile_context>
chip_gen: v5e
topology: v5e:2x2
jax: 0.10.0
libtpu: 0.0.40
codegen_flags: <defaults>
</compile_context>

<pallas_src>
import jax
import jax.numpy as jnp
from jax.experimental import pallas as pl
from jax.experimental.pallas import tpu as pltpu  # noqa: F401  (TPU backend)

# ----------------------- small synthetic BERT config -----------------------
VOCAB = 100
HIDDEN = 32
N_LAYERS = 2
N_HEADS = 4
HEAD_DIM = HIDDEN // N_HEADS
INTERMEDIATE = 64
MAX_POS = 16
NUM_LABELS = 12          # len(ASPECTS)
LN_EPS = 1e-12
DTYPE = jnp.float32


# ------------------------------ fused kernel --------------------------------
def _encoder_kernel(
    x_ref, mask_ref, emb_g_ref, emb_b_ref,
    qkv_w_ref, qkv_b_ref, ao_w_ref, ao_b_ref,
    aln_g_ref, aln_b_ref, up_w_ref, up_b_ref,
    dn_w_ref, dn_b_ref, oln_g_ref, oln_b_ref,
    cls_w_ref, cls_b_ref,
    logits_ref,
):
    f32 = jnp.float32

    def layer_norm(v, g, b):
        mean = jnp.mean(v, axis=-1, keepdims=True)
        var = jnp.mean((v - mean) ** 2, axis=-1, keepdims=True)
        return (v - mean) * jax.lax.rsqrt(var + LN_EPS) * g + b

    def gelu(v):  # exact erf-based GELU (as in BERT)
        return 0.5 * v * (1.0 + jax.lax.erf(v * 0.7071067811865476))

    x = x_ref[...].astype(f32)          # [M, H], M = B*S, hidden on lanes
    mask = mask_ref[...]                # [M, M] additive (0 / -1e9), f32

    x = layer_norm(x, emb_g_ref[...], emb_b_ref[...])

    scale = 1.0 / float(HEAD_DIM) ** 0.5
    nt_dims = (((1,), (1,)), ((), ()))  # contract last dims: q @ k^T w/o transpose

    for l in range(N_LAYERS):           # static unroll, weights stay in VMEM
        # ---- fused QKV projection: one MXU pass over x ----
        qkv = jnp.dot(x, qkv_w_ref[l], preferred_element_type=f32) + qkv_b_ref[l]
        q = qkv[:, 0 * HIDDEN:1 * HIDDEN]
        k = qkv[:, 1 * HIDDEN:2 * HIDDEN]
        v = qkv[:, 2 * HIDDEN:3 * HIDDEN]

        # ---- multi-head self-attention; heads are HEAD_DIM lane slices ----
        ao_w = ao_w_ref[l]              # [H, H]
        attn = jnp.zeros_like(x)
        for h in range(N_HEADS):        # static unroll
            sl = slice(h * HEAD_DIM, (h + 1) * HEAD_DIM)
            s = jax.lax.dot_general(q[:, sl], k[:, sl], nt_dims,
                                    preferred_element_type=f32) * scale
            s = s + mask                                   # batch-block + padding
            s = s - jnp.max(s, axis=-1, keepdims=True)
            p = jnp.exp(s)
            p = p * pl.reciprocal(jnp.sum(p, axis=-1, keepdims=True), approx=True)
            ctx = jnp.dot(p, v[:, sl], preferred_element_type=f32)     # [M, Dh]
            # fold the output projection per head: concat_h(ctx_h) @ Wo
            attn = attn + jnp.dot(ctx, ao_w[sl, :], preferred_element_type=f32)
        attn = attn + ao_b_ref[l]
        x = layer_norm(attn + x, aln_g_ref[l], aln_b_ref[l])

        # ---- feed-forward ----
        hmid = jnp.dot(x, up_w_ref[l], preferred_element_type=f32) + up_b_ref[l]
        hmid = gelu(hmid)
        hmid = jnp.dot(hmid, dn_w_ref[l], preferred_element_type=f32) + dn_b_ref[l]
        x = layer_norm(hmid + x, oln_g_ref[l], oln_b_ref[l])

    # classification head applied to every token (tiny); CLS rows are selected
    # by the wrapper. Only this final (M, 12) store is lane-narrow.
    logits = jnp.dot(x, cls_w_ref[...], preferred_element_type=f32) + cls_b_ref[...]
    logits_ref[...] = logits.astype(logits_ref.dtype)


def _full_spec(shape):
    nd = len(shape)
    return pl.BlockSpec(shape, lambda i, _nd=nd: (0,) * _nd)


# ----------------------------- model definition -----------------------------
def init_params(key):
    def w(k, shape):
        return 0.02 * jax.random.normal(k, shape, DTYPE)

    keys = iter(jax.random.split(key, 10))
    return {
        "word_emb": w(next(keys), (VOCAB, HIDDEN)),
        "pos_emb": w(next(keys), (MAX_POS, HIDDEN)),
        "type_emb": w(next(keys), (2, HIDDEN)),
        "emb_ln_g": jnp.ones((1, HIDDEN), DTYPE),
        "emb_ln_b": jnp.zeros((1, HIDDEN), DTYPE),
        # fused QKV weights, stacked over layers
        "qkv_w": w(next(keys), (N_LAYERS, HIDDEN, 3 * HIDDEN)),
        "qkv_b": jnp.zeros((N_LAYERS, 1, 3 * HIDDEN), DTYPE),
        "ao_w": w(next(keys), (N_LAYERS, HIDDEN, HIDDEN)),
        "ao_b": jnp.zeros((N_LAYERS, 1, HIDDEN), DTYPE),
        "aln_g": jnp.ones((N_LAYERS, 1, HIDDEN), DTYPE),
        "aln_b": jnp.zeros((N_LAYERS, 1, HIDDEN), DTYPE),
        "up_w": w(next(keys), (N_LAYERS, HIDDEN, INTERMEDIATE)),
        "up_b": jnp.zeros((N_LAYERS, 1, INTERMEDIATE), DTYPE),
        "dn_w": w(next(keys), (N_LAYERS, INTERMEDIATE, HIDDEN)),
        "dn_b": jnp.zeros((N_LAYERS, 1, HIDDEN), DTYPE),
        "oln_g": jnp.ones((N_LAYERS, 1, HIDDEN), DTYPE),
        "oln_b": jnp.zeros((N_LAYERS, 1, HIDDEN), DTYPE),
        "cls_w": w(next(keys), (HIDDEN, NUM_LABELS)),
        "cls_b": jnp.zeros((1, NUM_LABELS), DTYPE),
    }


def aspect_classifier_forward(params, input_ids, attention_mask):
    B, S = input_ids.shape
    M = B * S

    # Embedding gathers stay in plain JAX (glue); everything else is one
    # fused Pallas call.
    # TODO(synk): token_type_ids are hard-coded to segment 0 (single-segment
    # inference), matching the original call signature which passes none.
    x = (params["word_emb"][input_ids]
         + params["pos_emb"][jnp.arange(S)][None, :, :]
         + params["type_emb"][0][None, None, :])            # [B, S, H]
    x = x.reshape(M, HIDDEN).astype(DTYPE)

    # [M, M] additive mask: 0 where (same batch AND key not padded), else -1e9.
    batch_ids = jnp.repeat(jnp.arange(B), S)                 # [M]
    same_batch = batch_ids[:, None] == batch_ids[None, :]
    key_ok = (attention_mask.reshape(-1) > 0)[None, :]
    mask_add = jnp.where(same_batch & key_ok, 0.0, -1e9).astype(jnp.float32)

    inputs = [
        x, mask_add, params["emb_ln_g"], params["emb_ln_b"],
        params["qkv_w"], params["qkv_b"], params["ao_w"], params["ao_b"],
        params["aln_g"], params["aln_b"], params["up_w"], params["up_b"],
        params["dn_w"], params["dn_b"], params["oln_g"], params["oln_b"],
        params["cls_w"], params["cls_b"],
    ]

    logits_all = pl.pallas_call(
        _encoder_kernel,
        out_shape=jax.ShapeDtypeStruct((M, NUM_LABELS), DTYPE),
        grid=(1,),
        in_specs=[_full_spec(a.shape) for a in inputs],
        out_specs=_full_spec((M, NUM_LABELS)),
    )(*inputs)

    # logits of the [CLS] token of each sequence
    return logits_all.reshape(B, S, NUM_LABELS)[:, 0, :]


# ---------------------------------- main ------------------------------------
if __name__ == "__main__":
    key = jax.random.PRNGKey(0)
    k_params, k_ids = jax.random.split(key)

    B, S = 2, 8
    params = init_params(k_params)
    input_ids = jax.random.randint(k_ids, (B, S), 0, VOCAB, dtype=jnp.int32)
    attention_mask = jnp.array([[1, 1, 1, 1, 1, 1, 1, 1],
                                [1, 1, 1, 1, 1, 1, 0, 0]], dtype=jnp.int32)

    logits = jax.jit(aspect_classifier_forward)(params, input_ids, attention_mask)
    logits = jax.block_until_ready(logits)
    assert logits.shape == (B, NUM_LABELS)
    assert bool(jnp.all(jnp.isfinite(logits)))
    # TODO(synk): pretrained checkpoint loading / tokenization has no Pallas
    # equivalent; weights are synthetic and deterministic.
    print("KERNEL_OK")
</pallas_src>

<mosaic_0001>
module attributes {stable_mosaic.version = 11 : i64} {
  func.func @_encoder_kernel(%arg0: i32, %arg1: memref<16x32xf32, #tpu.memory_space<vmem>>, %arg2: memref<16x16xf32, #tpu.memory_space<vmem>>, %arg3: memref<1x32xf32, #tpu.memory_space<vmem>>, %arg4: memref<1x32xf32, #tpu.memory_space<vmem>>, %arg5: memref<2x32x96xf32, #tpu.memory_space<vmem>>, %arg6: memref<2x1x96xf32, #tpu.memory_space<vmem>>, %arg7: memref<2x32x32xf32, #tpu.memory_space<vmem>>, %arg8: memref<2x1x32xf32, #tpu.memory_space<vmem>>, %arg9: memref<2x1x32xf32, #tpu.memory_space<vmem>>, %arg10: memref<2x1x32xf32, #tpu.memory_space<vmem>>, %arg11: memref<2x32x64xf32, #tpu.memory_space<vmem>>, %arg12: memref<2x1x64xf32, #tpu.memory_space<vmem>>, %arg13: memref<2x64x32xf32, #tpu.memory_space<vmem>>, %arg14: memref<2x1x32xf32, #tpu.memory_space<vmem>>, %arg15: memref<2x1x32xf32, #tpu.memory_space<vmem>>, %arg16: memref<2x1x32xf32, #tpu.memory_space<vmem>>, %arg17: memref<32x12xf32, #tpu.memory_space<vmem>>, %arg18: memref<1x12xf32, #tpu.memory_space<vmem>>, %arg19: memref<16x12xf32, #tpu.memory_space<vmem>>) attributes {dimension_semantics = [#tpu.dimension_semantics<arbitrary>], iteration_bounds = array<i64: 1>, scalar_prefetch = 0 : i64, scratch_operands = 0 : i64, tpu.core_type = #tpu.core_type<tc>, window_params = [{pipeline_mode = #tpu.pipeline_mode<synchronous>, transform_indices = @transform_0, window_bounds = array<i64: 16, 32>}, {pipeline_mode = #tpu.pipeline_mode<synchronous>, transform_indices = @transform_1, window_bounds = array<i64: 16, 16>}, {pipeline_mode = #tpu.pipeline_mode<synchronous>, transform_indices = @transform_2, window_bounds = array<i64: 1, 32>}, {pipeline_mode = #tpu.pipeline_mode<synchronous>, transform_indices = @transform_3, window_bounds = array<i64: 1, 32>}, {pipeline_mode = #tpu.pipeline_mode<synchronous>, transform_indices = @transform_4, window_bounds = array<i64: 2, 32, 96>}, {pipeline_mode = #tpu.pipeline_mode<synchronous>, transform_indices = @transform_5, window_bounds = array<i64: 2, 1, 96>}, {pipeline_mode = #tpu.pipeline_mode<synchronous>, transform_indices = @transform_6, window_bounds = array<i64: 2, 32, 32>}, {pipeline_mode = #tpu.pipeline_mode<synchronous>, transform_indices = @transform_7, window_bounds = array<i64: 2, 1, 32>}, {pipeline_mode = #tpu.pipeline_mode<synchronous>, transform_indices = @transform_8, window_bounds = array<i64: 2, 1, 32>}, {pipeline_mode = #tpu.pipeline_mode<synchronous>, transform_indices = @transform_9, window_bounds = array<i64: 2, 1, 32>}, {pipeline_mode = #tpu.pipeline_mode<synchronous>, transform_indices = @transform_10, window_bounds = array<i64: 2, 32, 64>}, {pipeline_mode = #tpu.pipeline_mode<synchronous>, transform_indices = @transform_11, window_bounds = array<i64: 2, 1, 64>}, {pipeline_mode = #tpu.pipeline_mode<synchronous>, transform_indices = @transform_12, window_bounds = array<i64: 2, 64, 32>}, {pipeline_mode = #tpu.pipeline_mode<synchronous>, transform_indices = @transform_13, window_bounds = array<i64: 2, 1, 32>}, {pipeline_mode = #tpu.pipeline_mode<synchronous>, transform_indices = @transform_14, window_bounds = array<i64: 2, 1, 32>}, {pipeline_mode = #tpu.pipeline_mode<synchronous>, transform_indices = @transform_15, window_bounds = array<i64: 2, 1, 32>}, {pipeline_mode = #tpu.pipeline_mode<synchronous>, transform_indices = @transform_16, window_bounds = array<i64: 32, 12>}, {pipeline_mode = #tpu.pipeline_mode<synchronous>, transform_indices = @transform_17, window_bounds = array<i64: 1, 12>}, {pipeline_mode = #tpu.pipeline_mode<synchronous>, transform_indices = @transform_18, window_bounds = array<i64: 16, 12>}]} {
    %c0 = arith.constant 0 : index
    %c0_0 = arith.constant 0 : index
    %0 = vector.load %arg1[%c0, %c0_0] : memref<16x32xf32, #tpu.memory_space<vmem>>, vector<16x32xf32>
    %c0_1 = arith.constant 0 : index
    %c0_2 = arith.constant 0 : index
    %1 = vector.load %arg2[%c0_1, %c0_2] : memref<16x16xf32, #tpu.memory_space<vmem>>, vector<16x16xf32>
    %c0_3 = arith.constant 0 : index
    %c0_4 = arith.constant 0 : index
    %2 = vector.load %arg3[%c0_3, %c0_4] : memref<1x32xf32, #tpu.memory_space<vmem>>, vector<1x32xf32>
    %c0_5 = arith.constant 0 : index
    %c0_6 = arith.constant 0 : index
    %3 = vector.load %arg4[%c0_5, %c0_6] : memref<1x32xf32, #tpu.memory_space<vmem>>, vector<1x32xf32>
    %cst = arith.constant dense<0.000000e+00> : vector<16xf32>
    %4 = vector.multi_reduction <add>, %0, %cst [1] : vector<16x32xf32> to vector<16xf32>
    %5 = vector.shape_cast %4 : vector<16xf32> to vector<16x1xf32>
    %cst_7 = arith.constant 3.200000e+01 : f32
    %6 = vector.broadcast %cst_7 : f32 to vector<16x1xf32>
    %7 = arith.divf %5, %6 : vector<16x1xf32>
    %8 = vector.broadcast %7 : vector<16x1xf32> to vector<16x32xf32>
    %9 = arith.subf %0, %8 : vector<16x32xf32>
    %10 = arith.mulf %9, %9 : vector<16x32xf32>
    %cst_8 = arith.constant dense<0.000000e+00> : vector<16xf32>
    %11 = vector.multi_reduction <add>, %10, %cst_8 [1] : vector<16x32xf32> to vector<16xf32>
    %12 = vector.shape_cast %11 : vector<16xf32> to vector<16x1xf32>
    %cst_9 = arith.constant 3.200000e+01 : f32
    %13 = vector.broadcast %cst_9 : f32 to vector<16x1xf32>
    %14 = arith.divf %12, %13 : vector<16x1xf32>
    %15 = vector.broadcast %7 : vector<16x1xf32> to vector<16x32xf32>
    %16 = arith.subf %0, %15 : vector<16x32xf32>
    %cst_10 = arith.constant 9.99999996E-13 : f32
    %17 = vector.broadcast %cst_10 : f32 to vector<16x1xf32>
    %18 = arith.addf %14, %17 : vector<16x1xf32>
    %19 = math.rsqrt %18 : vector<16x1xf32>
    %20 = vector.broadcast %19 : vector<16x1xf32> to vector<16x32xf32>
    %21 = arith.mulf %16, %20 : vector<16x32xf32>
    %22 = vector.broadcast %2 : vector<1x32xf32> to vector<16x32xf32>
    %23 = arith.mulf %21, %22 : vector<16x32xf32>
    %24 = vector.broadcast %3 : vector<1x32xf32> to vector<16x32xf32>
    %25 = arith.addf %23, %24 : vector<16x32xf32>
    %c0_11 = arith.constant 0 : index
    %c0_12 = arith.constant 0 : index
    %c0_13 = arith.constant 0 : index
    %26 = vector.load %arg5[%c0_11, %c0_12, %c0_13] : memref<2x32x96xf32, #tpu.memory_space<vmem>>, vector<1x32x96xf32>
    %27 = vector.shape_cast %26 : vector<1x32x96xf32> to vector<32x96xf32>
    %cst_14 = arith.constant dense<0.000000e+00> : vector<16x96xf32>
    %28 = tpu.matmul %25, %27, %cst_14 {dimension_numbers = #tpu.dot_dimension_numbers<[1], [0], [0], [1], [0, 0, 1, 1], [], []>} : vector<16x32xf32>, vector<32x96xf32>, vector<16x96xf32> -> vector<16x96xf32>
    %c0_15 = arith.constant 0 : index
    %c0_16 = arith.constant 0 : index
    %c0_17 = arith.constant 0 : index
    %29 = vector.load %arg6[%c0_15, %c0_16, %c0_17] : memref<2x1x96xf32, #tpu.memory_space<vmem>>, vector<1x1x96xf32>
    %30 = vector.shape_cast %29 : vector<1x1x96xf32> to vector<1x96xf32>
    %31 = vector.broadcast %30 : vector<1x96xf32> to vector<16x96xf32>
    %32 = arith.addf %28, %31 : vector<16x96xf32>
    %33 = vector.extract_strided_slice %32 {offsets = [0, 0], sizes = [16, 32], strides = [1, 1]} : vector<16x96xf32> to vector<16x32xf32>
    %34 = vector.extract_strided_slice %32 {offsets = [0, 32], sizes = [16, 32], strides = [1, 1]} : vector<16x96xf32> to vector<16x32xf32>
    %35 = vector.extract_strided_slice %32 {offsets = [0, 64], sizes = [16, 32], strides = [1, 1]} : vector<16x96xf32> to vector<16x32xf32>
    %c0_18 = arith.constant 0 : index
    %c0_19 = arith.constant 0 : index
    %c0_20 = arith.constant 0 : index
    %36 = vector.load %arg7[%c0_18, %c0_19, %c0_20] : memref<2x32x32xf32, #tpu.memory_space<vmem>>, vector<1x32x32xf32>
    %37 = vector.shape_cast %36 : vector<1x32x32xf32> to vector<32x32xf32>
    %cst_21 = arith.constant 0.000000e+00 : f32
    %38 = vector.broadcast %cst_21 : f32 to vector<16x32xf32>
    %39 = vector.extract_strided_slice %33 {offsets = [0, 0], sizes = [16, 8], strides = [1, 1]} : vector<16x32xf32> to vector<16x8xf32>
    %40 = vector.extract_strided_slice %34 {offsets = [0, 0], sizes = [16, 8], strides = [1, 1]} : vector<16x32xf32> to vector<16x8xf32>
    %cst_22 = arith.constant dense<0.000000e+00> : vector<16x16xf32>
    %41 = tpu.matmul %39, %40, %cst_22 {dimension_numbers = #tpu.dot_dimension_numbers<[1], [1], [0], [0], [0, 0, 1, 0], [], []>} : vector<16x8xf32>, vector<16x8xf32>, vector<16x16xf32> -> vector<16x16xf32>
    %cst_23 = arith.constant 0.353553385 : f32
    %42 = vector.broadcast %cst_23 : f32 to vector<16x16xf32>
    %43 = arith.mulf %41, %42 : vector<16x16xf32>
    %44 = arith.addf %43, %1 : vector<16x16xf32>
    %cst_24 = arith.constant dense<0xFF800000> : vector<16xf32>
    %45 = vector.multi_reduction <maximumf>, %44, %cst_24 [1] : vector<16x16xf32> to vector<16xf32>
    %46 = vector.shape_cast %45 : vector<16xf32> to vector<16x1xf32>
    %47 = vector.broadcast %46 : vector<16x1xf32> to vector<16x16xf32>
    %48 = arith.subf %44, %47 : vector<16x16xf32>
    %49 = math.exp %48 : vector<16x16xf32>
    %cst_25 = arith.constant dense<0.000000e+00> : vector<16xf32>
    %50 = vector.multi_reduction <add>, %49, %cst_25 [1] : vector<16x16xf32> to vector<16xf32>
    %51 = vector.shape_cast %50 : vector<16xf32> to vector<16x1xf32>
    %52 = tpu.reciprocal %51 {approx = true} : vector<16x1xf32> -> vector<16x1xf32>
    %53 = vector.broadcast %52 : vector<16x1xf32> to vector<16x16xf32>
    %54 = arith.mulf %49, %53 : vector<16x16xf32>
    %55 = vector.extract_strided_slice %35 {offsets = [0, 0], sizes = [16, 8], strides = [1, 1]} : vector<16x32xf32> to vector<16x8xf32>
    %cst_26 = arith.constant dense<0.000000e+00> : vector<16x8xf32>
    %56 = tpu.matmul %54, %55, %cst_26 {dimension_numbers = #tpu.dot_dimension_numbers<[1], [0], [0], [1], [0, 0, 1, 1], [], []>} : vector<16x16xf32>, vector<16x8xf32>, vector<16x8xf32> -> vector<16x8xf32>
    %57 = vector.extract_strided_slice %37 {offsets = [0, 0], sizes = [8, 32], strides = [1, 1]} : vector<32x32xf32> to vector<8x32xf32>
    %cst_27 = arith.constant dense<0.000000e+00> : vector<16x32xf32>
    %58 = tpu.matmul %56, %57, %cst_27 {dimension_numbers = #tpu.dot_dimension_numbers<[1], [0], [0], [1], [0, 0, 1, 1], [], []>} : vector<16x8xf32>, vector<8x32xf32>, vector<16x32xf32> -> vector<16x32xf32>
    %59 = arith.addf %38, %58 : vector<16x32xf32>
    %60 = vector.extract_strided_slice %33 {offsets = [0, 8], sizes = [16, 8], strides = [1, 1]} : vector<16x32xf32> to vector<16x8xf32>
    %61 = vector.extract_strided_slice %34 {offsets = [0, 8], sizes = [16, 8], strides = [1, 1]} : vector<16x32xf32> to vector<16x8xf32>
    %cst_28 = arith.constant dense<0.000000e+00> : vector<16x16xf32>
    %62 = tpu.matmul %60, %61, %cst_28 {dimension_numbers = #tpu.dot_dimension_numbers<[1], [1], [0], [0], [0, 0, 1, 0], [], []>} : vector<16x8xf32>, vector<16x8xf32>, vector<16x16xf32> -> vector<16x16xf32>
    %cst_29 = arith.constant 0.353553385 : f32
    %63 = vector.broadcast %cst_29 : f32 to vector<16x16xf32>
    %64 = arith.mulf %62, %63 : vector<16x16xf32>
    %65 = arith.addf %64, %1 : vector<16x16xf32>
    %cst_30 = arith.constant dense<0xFF800000> : vector<16xf32>
    %66 = vector.multi_reduction <maximumf>, %65, %cst_30 [1] : vector<16x16xf32> to vector<16xf32>
    %67 = vector.shape_cast %66 : vector<16xf32> to vector<16x1xf32>
    %68 = vector.broadcast %67 : vector<16x1xf32> to vector<16x16xf32>
    %69 = arith.subf %65, %68 : vector<16x16xf32>
    %70 = math.exp %69 : vector<16x16xf32>
    %cst_31 = arith.constant dense<0.000000e+00> : vector<16xf32>
    %71 = vector.multi_reduction <add>, %70, %cst_31 [1] : vector<16x16xf32> to vector<16xf32>
    %72 = vector.shape_cast %71 : vector<16xf32> to vector<16x1xf32>
    %73 = tpu.reciprocal %72 {approx = true} : vector<16x1xf32> -> vector<16x1xf32>
    %74 = vector.broadcast %73 : vector<16x1xf32> to vector<16x16xf32>
    %75 = arith.mulf %70, %74 : vector<16x16xf32>
    %76 = vector.extract_strided_slice %35 {offsets = [0, 8], sizes = [16, 8], strides = [1, 1]} : vector<16x32xf32> to vector<16x8xf32>
    %cst_32 = arith.constant dense<0.000000e+00> : vector<16x8xf32>
    %77 = tpu.matmul %75, %76, %cst_32 {dimension_numbers = #tpu.dot_dimension_numbers<[1], [0], [0], [1], [0, 0, 1, 1], [], []>} : vector<16x16xf32>, vector<16x8xf32>, vector<16x8xf32> -> vector<16x8xf32>
    %78 = vector.extract_strided_slice %37 {offsets = [8, 0], sizes = [8, 32], strides = [1, 1]} : vector<32x32xf32> to vector<8x32xf32>
    %cst_33 = arith.constant dense<0.000000e+00> : vector<16x32xf32>
    %79 = tpu.matmul %77, %78, %cst_33 {dimension_numbers = #tpu.dot_dimension_numbers<[1], [0], [0], [1], [0, 0, 1, 1], [], []>} : vector<16x8xf32>, vector<8x32xf32>, vector<16x32xf32> -> vector<16x32xf32>
    %80 = arith.addf %59, %79 : vector<16x32xf32>
    %81 = vector.extract_strided_slice %33 {offsets = [0, 16], sizes = [16, 8], strides = [1, 1]} : vector<16x32xf32> to vector<16x8xf32>
    %82 = vector.extract_strided_slice %34 {offsets = [0, 16], sizes = [16, 8], strides = [1, 1]} : vector<16x32xf32> to vector<16x8xf32>
    %cst_34 = arith.constant dense<0.000000e+00> : vector<16x16xf32>
    %83 = tpu.matmul %81, %82, %cst_34 {dimension_numbers = #tpu.dot_dimension_numbers<[1], [1], [0], [0], [0, 0, 1, 0], [], []>} : vector<16x8xf32>, vector<16x8xf32>, vector<16x16xf32> -> vector<16x16xf32>
    %cst_35 = arith.constant 0.353553385 : f32
    %84 = vector.broadcast %cst_35 : f32 to vector<16x16xf32>
    %85 = arith.mulf %83, %84 : vector<16x16xf32>
    %86 = arith.addf %85, %1 : vector<16x16xf32>
    %cst_36 = arith.constant dense<0xFF800000> : vector<16xf32>
    %87 = vector.multi_reduction <maximumf>, %86, %cst_36 [1] : vector<16x16xf32> to vector<16xf32>
    %88 = vector.shape_cast %87 : vector<16xf32> to vector<16x1xf32>
    %89 = vector.broadcast %88 : vector<16x1xf32> to vector<16x16xf32>
    %90 = arith.subf %86, %89 : vector<16x16xf32>
    %91 = math.exp %90 : vector<16x16xf32>
    %cst_37 = arith.constant dense<0.000000e+00> : vector<16xf32>
    %92 = vector.multi_reduction <add>, %91, %cst_37 [1] : vector<16x16xf32> to vector<16xf32>
    %93 = vector.shape_cast %92 : vector<16xf32> to vector<16x1xf32>
    %94 = tpu.reciprocal %93 {approx = true} : vector<16x1xf32> -> vector<16x1xf32>
    %95 = vector.broadcast %94 : vector<16x1xf32> to vector<16x16xf32>
    %96 = arith.mulf %91, %95 : vector<16x16xf32>
    %97 = vector.extract_strided_slice %35 {offsets = [0, 16], sizes = [16, 8], strides = [1, 1]} : vector<16x32xf32> to vector<16x8xf32>
    %cst_38 = arith.constant dense<0.000000e+00> : vector<16x8xf32>
    %98 = tpu.matmul %96, %97, %cst_38 {dimension_numbers = #tpu.dot_dimension_numbers<[1], [0], [0], [1], [0, 0, 1, 1], [], []>} : vector<16x16xf32>, vector<16x8xf32>, vector<16x8xf32> -> vector<16x8xf32>
    %99 = vector.extract_strided_slice %37 {offsets = [16, 0], sizes = [8, 32], strides = [1, 1]} : vector<32x32xf32> to vector<8x32xf32>
    %cst_39 = arith.constant dense<0.000000e+00> : vector<16x32xf32>
    %100 = tpu.matmul %98, %99, %cst_39 {dimension_numbers = #tpu.dot_dimension_numbers<[1], [0], [0], [1], [0, 0, 1, 1], [], []>} : vector<16x8xf32>, vector<8x32xf32>, vector<16x32xf32> -> vector<16x32xf32>
    %101 = arith.addf %80, %100 : vector<16x32xf32>
    %102 = vector.extract_strided_slice %33 {offsets = [0, 24], sizes = [16, 8], strides = [1, 1]} : vector<16x32xf32> to vector<16x8xf32>
    %103 = vector.extract_strided_slice %34 {offsets = [0, 24], sizes = [16, 8], strides = [1, 1]} : vector<16x32xf32> to vector<16x8xf32>
    %cst_40 = arith.constant dense<0.000000e+00> : vector<16x16xf32>
    %104 = tpu.matmul %102, %103, %cst_40 {dimension_numbers = #tpu.dot_dimension_numbers<[1], [1], [0], [0], [0, 0, 1, 0], [], []>} : vector<16x8xf32>, vector<16x8xf32>, vector<16x16xf32> -> vector<16x16xf32>
    %cst_41 = arith.constant 0.353553385 : f32
    %105 = vector.broadcast %cst_41 : f32 to vector<16x16xf32>
    %106 = arith.mulf %104, %105 : vector<16x16xf32>
    %107 = arith.addf %106, %1 : vector<16x16xf32>
    %cst_42 = arith.constant dense<0xFF800000> : vector<16xf32>
    %108 = vector.multi_reduction <maximumf>, %107, %cst_42 [1] : vector<16x16xf32> to vector<16xf32>
    %109 = vector.shape_cast %108 : vector<16xf32> to vector<16x1xf32>
    %110 = vector.broadcast %109 : vector<16x1xf32> to vector<16x16xf32>
    %111 = arith.subf %107, %110 : vector<16x16xf32>
    %112 = math.exp %111 : vector<16x16xf32>
    %cst_43 = arith.constant dense<0.000000e+00> : vector<16xf32>
    %113 = vector.multi_reduction <add>, %112, %cst_43 [1] : vector<16x16xf32> to vector<16xf32>
    %114 = vector.shape_cast %113 : vector<16xf32> to vector<16x1xf32>
    %115 = tpu.reciprocal %114 {approx = true} : vector<16x1xf32> -> vector<16x1xf32>
    %116 = vector.broadcast %115 : vector<16x1xf32> to vector<16x16xf32>
    %117 = arith.mulf %112, %116 : vector<16x16xf32>
    %118 = vector.extract_strided_slice %35 {offsets = [0, 24], sizes = [16, 8], strides = [1, 1]} : vector<16x32xf32> to vector<16x8xf32>
    %cst_44 = arith.constant dense<0.000000e+00> : vector<16x8xf32>
    %119 = tpu.matmul %117, %118, %cst_44 {dimension_numbers = #tpu.dot_dimension_numbers<[1], [0], [0], [1], [0, 0, 1, 1], [], []>} : vector<16x16xf32>, vector<16x8xf32>, vector<16x8xf32> -> vector<16x8xf32>
    %120 = vector.extract_strided_slice %37 {offsets = [24, 0], sizes = [8, 32], strides = [1, 1]} : vector<32x32xf32> to vector<8x32xf32>
    %cst_45 = arith.constant dense<0.000000e+00> : vector<16x32xf32>
    %121 = tpu.matmul %119, %120, %cst_45 {dimension_numbers = #tpu.dot_dimension_numbers<[1], [0], [0], [1], [0, 0, 1, 1], [], []>} : vector<16x8xf32>, vector<8x32xf32>, vector<16x32xf32> -> vector<16x32xf32>
    %122 = arith.addf %101, %121 : vector<16x32xf32>
    %c0_46 = arith.constant 0 : index
    %c0_47 = arith.constant 0 : index
    %c0_48 = arith.constant 0 : index
    %123 = vector.load %arg8[%c0_46, %c0_47, %c0_48] : memref<2x1x32xf32, #tpu.memory_space<vmem>>, vector<1x1x32xf32>
    %124 = vector.shape_cast %123 : vector<1x1x32xf32> to vector<1x32xf32>
    %125 = vector.broadcast %124 : vector<1x32xf32> to vector<16x32xf32>
    %126 = arith.addf %122, %125 : vector<16x32xf32>
    %127 = arith.addf %126, %25 : vector<16x32xf32>
    %c0_49 = arith.constant 0 : index
    %c0_50 = arith.constant 0 : index
    %c0_51 = arith.constant 0 : index
    %128 = vector.load %arg9[%c0_49, %c0_50, %c0_51] : memref<2x1x32xf32, #tpu.memory_space<vmem>>, vector<1x1x32xf32>
    %129 = vector.shape_cast %128 : vector<1x1x32xf32> to vector<1x32xf32>
    %c0_52 = arith.constant 0 : index
    %c0_53 = arith.constant 0 : index
    %c0_54 = arith.constant 0 : index
    %130 = vector.load %arg10[%c0_52, %c0_53, %c0_54] : memref<2x1x32xf32, #tpu.memory_space<vmem>>, vector<1x1x32xf32>
    %131 = vector.shape_cast %130 : vector<1x1x32xf32> to vector<1x32xf32>
    %cst_55 = arith.constant dense<0.000000e+00> : vector<16xf32>
    %132 = vector.multi_reduction <add>, %127, %cst_55 [1] : vector<16x32xf32> to vector<16xf32>
    %133 = vector.shape_cast %132 : vector<16xf32> to vector<16x1xf32>
    %cst_56 = arith.constant 3.200000e+01 : f32
    %134 = vector.broadcast %cst_56 : f32 to vector<16x1xf32>
    %135 = arith.divf %133, %134 : vector<16x1xf32>
    %136 = vector.broadcast %135 : vector<16x1xf32> to vector<16x32xf32>
    %137 = arith.subf %127, %136 : vector<16x32xf32>
    %138 = arith.mulf %137, %137 : vector<16x32xf32>
    %cst_57 = arith.constant dense<0.000000e+00> : vector<16xf32>
    %139 = vector.multi_reduction <add>, %138, %cst_57 [1] : vector<16x32xf32> to vector<16xf32>
    %140 = vector.shape_cast %139 : vector<16xf32> to vector<16x1xf32>
    %cst_58 = arith.constant 3.200000e+01 : f32
    %141 = vector.broadcast %cst_58 : f32 to vector<16x1xf32>
    %142 = arith.divf %140, %141 : vector<16x1xf32>
    %143 = vector.broadcast %135 : vector<16x1xf32> to vector<16x32xf32>
    %144 = arith.subf %127, %143 : vector<16x32xf32>
    %cst_59 = arith.constant 9.99999996E-13 : f32
    %145 = vector.broadcast %cst_59 : f32 to vector<16x1xf32>
    %146 = arith.addf %142, %145 : vector<16x1xf32>
    %147 = math.rsqrt %146 : vector<16x1xf32>
    %148 = vector.broadcast %147 : vector<16x1xf32> to vector<16x32xf32>
    %149 = arith.mulf %144, %148 : vector<16x32xf32>
    %150 = vector.broadcast %129 : vector<1x32xf32> to vector<16x32xf32>
    %151 = arith.mulf %149, %150 : vector<16x32xf32>
    %152 = vector.broadcast %131 : vector<1x32xf32> to vector<16x32xf32>
    %153 = arith.addf %151, %152 : vector<16x32xf32>
    %c0_60 = arith.constant 0 : index
    %c0_61 = arith.constant 0 : index
    %c0_62 = arith.constant 0 : index
    %154 = vector.load %arg11[%c0_60, %c0_61, %c0_62] : memref<2x32x64xf32, #tpu.memory_space<vmem>>, vector<1x32x64xf32>
    %155 = vector.shape_cast %154 : vector<1x32x64xf32> to vector<32x64xf32>
    %cst_63 = arith.constant dense<0.000000e+00> : vector<16x64xf32>
    %156 = tpu.matmul %153, %155, %cst_63 {dimension_numbers = #tpu.dot_dimension_numbers<[1], [0], [0], [1], [0, 0, 1, 1], [], []>} : vector<16x32xf32>, vector<32x64xf32>, vector<16x64xf32> -> vector<16x64xf32>
    %c0_64 = arith.constant 0 : index
    %c0_65 = arith.constant 0 : index
    %c0_66 = arith.constant 0 : index
    %157 = vector.load %arg12[%c0_64, %c0_65, %c0_66] : memref<2x1x64xf32, #tpu.memory_space<vmem>>, vector<1x1x64xf32>
    %158 = vector.shape_cast %157 : vector<1x1x64xf32> to vector<1x64xf32>
    %159 = vector.broadcast %158 : vector<1x64xf32> to vector<16x64xf32>
    %160 = arith.addf %156, %159 : vector<16x64xf32>
    %cst_67 = arith.constant 5.000000e-01 : f32
    %161 = vector.broadcast %cst_67 : f32 to vector<16x64xf32>
    %162 = arith.mulf %161, %160 : vector<16x64xf32>
    %cst_68 = arith.constant 0.707106769 : f32
    %163 = vector.broadcast %cst_68 : f32 to vector<16x64xf32>
    %164 = arith.mulf %160, %163 : vector<16x64xf32>
    %165 = math.erf %164 : vector<16x64xf32>
    %cst_69 = arith.constant 1.000000e+00 : f32
    %166 = vector.broadcast %cst_69 : f32 to vector<16x64xf32>
    %167 = arith.addf %166, %165 : vector<16x64xf32>
    %168 = arith.mulf %162, %167 : vector<16x64xf32>
    %c0_70 = arith.constant 0 : index
    %c0_71 = arith.constant 0 : index
    %c0_72 = arith.constant 0 : index
    %169 = vector.load %arg13[%c0_70, %c0_71, %c0_72] : memref<2x64x32xf32, #tpu.memory_space<vmem>>, vector<1x64x32xf32>
    %170 = vector.shape_cast %169 : vector<1x64x32xf32> to vector<64x32xf32>
    %cst_73 = arith.constant dense<0.000000e+00> : vector<16x32xf32>
    %171 = tpu.matmul %168, %170, %cst_73 {dimension_numbers = #tpu.dot_dimension_numbers<[1], [0], [0], [1], [0, 0, 1, 1], [], []>} : vector<16x64xf32>, vector<64x32xf32>, vector<16x32xf32> -> vector<16x32xf32>
    %c0_74 = arith.constant 0 : index
    %c0_75 = arith.constant 0 : index
    %c0_76 = arith.constant 0 : index
    %172 = vector.load %arg14[%c0_74, %c0_75, %c0_76] : memref<2x1x32xf32, #tpu.memory_space<vmem>>, vector<1x1x32xf32>
    %173 = vector.shape_cast %172 : vector<1x1x32xf32> to vector<1x32xf32>
    %174 = vector.broadcast %173 : vector<1x32xf32> to vector<16x32xf32>
    %175 = arith.addf %171, %174 : vector<16x32xf32>
    %176 = arith.addf %175, %153 : vector<16x32xf32>
    %c0_77 = arith.constant 0 : index
    %c0_78 = arith.constant 0 : index
    %c0_79 = arith.constant 0 : index
    %177 = vector.load %arg15[%c0_77, %c0_78, %c0_79] : memref<2x1x32xf32, #tpu.memory_space<vmem>>, vector<1x1x32xf32>
    %178 = vector.shape_cast %177 : vector<1x1x32xf32> to vector<1x32xf32>
    %c0_80 = arith.constant 0 : index
    %c0_81 = arith.constant 0 : index
    %c0_82 = arith.constant 0 : index
    %179 = vector.load %arg16[%c0_80, %c0_81, %c0_82] : memref<2x1x32xf32, #tpu.memory_space<vmem>>, vector<1x1x32xf32>
    %180 = vector.shape_cast %179 : vector<1x1x32xf32> to vector<1x32xf32>
    %cst_83 = arith.constant dense<0.000000e+00> : vector<16xf32>
    %181 = vector.multi_reduction <add>, %176, %cst_83 [1] : vector<16x32xf32> to vector<16xf32>
    %182 = vector.shape_cast %181 : vector<16xf32> to vector<16x1xf32>
    %cst_84 = arith.constant 3.200000e+01 : f32
    %183 = vector.broadcast %cst_84 : f32 to vector<16x1xf32>
    %184 = arith.divf %182, %183 : vector<16x1xf32>
    %185 = vector.broadcast %184 : vector<16x1xf32> to vector<16x32xf32>
    %186 = arith.subf %176, %185 : vector<16x32xf32>
    %187 = arith.mulf %186, %186 : vector<16x32xf32>
    %cst_85 = arith.constant dense<0.000000e+00> : vector<16xf32>
    %188 = vector.multi_reduction <add>, %187, %cst_85 [1] : vector<16x32xf32> to vector<16xf32>
    %189 = vector.shape_cast %188 : vector<16xf32> to vector<16x1xf32>
    %cst_86 = arith.constant 3.200000e+01 : f32
    %190 = vector.broadcast %cst_86 : f32 to vector<16x1xf32>
    %191 = arith.divf %189, %190 : vector<16x1xf32>
    %192 = vector.broadcast %184 : vector<16x1xf32> to vector<16x32xf32>
    %193 = arith.subf %176, %192 : vector<16x32xf32>
    %cst_87 = arith.constant 9.99999996E-13 : f32
    %194 = vector.broadcast %cst_87 : f32 to vector<16x1xf32>
    %195 = arith.addf %191, %194 : vector<16x1xf32>
    %196 = math.rsqrt %195 : vector<16x1xf32>
    %197 = vector.broadcast %196 : vector<16x1xf32> to vector<16x32xf32>
    %198 = arith.mulf %193, %197 : vector<16x32xf32>
    %199 = vector.broadcast %178 : vector<1x32xf32> to vector<16x32xf32>
    %200 = arith.mulf %198, %199 : vector<16x32xf32>
    %201 = vector.broadcast %180 : vector<1x32xf32> to vector<16x32xf32>
    %202 = arith.addf %200, %201 : vector<16x32xf32>
    %c1 = arith.constant 1 : index
    %c0_88 = arith.constant 0 : index
    %c0_89 = arith.constant 0 : index
    %203 = vector.load %arg5[%c1, %c0_88, %c0_89] : memref<2x32x96xf32, #tpu.memory_space<vmem>>, vector<1x32x96xf32>
    %204 = vector.shape_cast %203 : vector<1x32x96xf32> to vector<32x96xf32>
    %cst_90 = arith.constant dense<0.000000e+00> : vector<16x96xf32>
    %205 = tpu.matmul %202, %204, %cst_90 {dimension_numbers = #tpu.dot_dimension_numbers<[1], [0], [0], [1], [0, 0, 1, 1], [], []>} : vector<16x32xf32>, vector<32x96xf32>, vector<16x96xf32> -> vector<16x96xf32>
    %c1_91 = arith.constant 1 : index
    %c0_92 = arith.constant 0 : index
    %c0_93 = arith.constant 0 : index
    %206 = vector.load %arg6[%c1_91, %c0_92, %c0_93] : memref<2x1x96xf32, #tpu.memory_space<vmem>>, vector<1x1x96xf32>
    %207 = vector.shape_cast %206 : vector<1x1x96xf32> to vector<1x96xf32>
    %208 = vector.broadcast %207 : vector<1x96xf32> to vector<16x96xf32>
    %209 = arith.addf %205, %208 : vector<16x96xf32>
    %210 = vector.extract_strided_slice %209 {offsets = [0, 0], sizes = [16, 32], strides = [1, 1]} : vector<16x96xf32> to vector<16x32xf32>
    %211 = vector.extract_strided_slice %209 {offsets = [0, 32], sizes = [16, 32], strides = [1, 1]} : vector<16x96xf32> to vector<16x32xf32>
    %212 = vector.extract_strided_slice %209 {offsets = [0, 64], sizes = [16, 32], strides = [1, 1]} : vector<16x96xf32> to vector<16x32xf32>
    %c1_94 = arith.constant 1 : index
    %c0_95 = arith.constant 0 : index
    %c0_96 = arith.constant 0 : index
    %213 = vector.load %arg7[%c1_94, %c0_95, %c0_96] : memref<2x32x32xf32, #tpu.memory_space<vmem>>, vector<1x32x32xf32>
    %214 = vector.shape_cast %213 : vector<1x32x32xf32> to vector<32x32xf32>
    %cst_97 = arith.constant 0.000000e+00 : f32
    %215 = vector.broadcast %cst_97 : f32 to vector<16x32xf32>
    %216 = vector.extract_strided_slice %210 {offsets = [0, 0], sizes = [16, 8], strides = [1, 1]} : vector<16x32xf32> to vector<16x8xf32>
    %217 = vector.extract_strided_slice %211 {offsets = [0, 0], sizes = [16, 8], strides = [1, 1]} : vector<16x32xf32> to vector<16x8xf32>
    %cst_98 = arith.constant dense<0.000000e+00> : vector<16x16xf32>
    %218 = tpu.matmul %216, %217, %cst_98 {dimension_numbers = #tpu.dot_dimension_numbers<[1], [1], [0], [0], [0, 0, 1, 0], [], []>} : vector<16x8xf32>, vector<16x8xf32>, vector<16x16xf32> -> vector<16x16xf32>
    %cst_99 = arith.constant 0.353553385 : f32
    %219 = vector.broadcast %cst_99 : f32 to vector<16x16xf32>
    %220 = arith.mulf %218, %219 : vector<16x16xf32>
    %221 = arith.addf %220, %1 : vector<16x16xf32>
    %cst_100 = arith.constant dense<0xFF800000> : vector<16xf32>
    %222 = vector.multi_reduction <maximumf>, %221, %cst_100 [1] : vector<16x16xf32> to vector<16xf32>
    %223 = vector.shape_cast %222 : vector<16xf32> to vector<16x1xf32>
    %224 = vector.broadcast %223 : vector<16x1xf32> to vector<16x16xf32>
    %225 = arith.subf %221, %224 : vector<16x16xf32>
    %226 = math.exp %225 : vector<16x16xf32>
    %cst_101 = arith.constant dense<0.000000e+00> : vector<16xf32>
    %227 = vector.multi_reduction <add>, %226, %cst_101 [1] : vector<16x16xf32> to vector<16xf32>
    %228 = vector.shape_cast %227 : vector<16xf32> to vector<16x1xf32>
    %229 = tpu.reciprocal %228 {approx = true} : vector<16x1xf32> -> vector<16x1xf32>
    %230 = vector.broadcast %229 : vector<16x1xf32> to vector<16x16xf32>
    %231 = arith.mulf %226, %230 : vector<16x16xf32>
    %232 = vector.extract_strided_slice %212 {offsets = [0, 0], sizes = [16, 8], strides = [1, 1]} : vector<16x32xf32> to vector<16x8xf32>
    %cst_102 = arith.constant dense<0.000000e+00> : vector<16x8xf32>
    %233 = tpu.matmul %231, %232, %cst_102 {dimension_numbers = #tpu.dot_dimension_numbers<[1], [0], [0], [1], [0, 0, 1, 1], [], []>} : vector<16x16xf32>, vector<16x8xf32>, vector<16x8xf32> -> vector<16x8xf32>
    %234 = vector.extract_strided_slice %214 {offsets = [0, 0], sizes = [8, 32], strides = [1, 1]} : vector<32x32xf32> to vector<8x32xf32>
    %cst_103 = arith.constant dense<0.000000e+00> : vector<16x32xf32>
    %235 = tpu.matmul %233, %234, %cst_103 {dimension_numbers = #tpu.dot_dimension_numbers<[1], [0], [0], [1], [0, 0, 1, 1], [], []>} : vector<16x8xf32>, vector<8x32xf32>, vector<16x32xf32> -> vector<16x32xf32>
    %236 = arith.addf %215, %235 : vector<16x32xf32>
    %237 = vector.extract_strided_slice %210 {offsets = [0, 8], sizes = [16, 8], strides = [1, 1]} : vector<16x32xf32> to vector<16x8xf32>
    %238 = vector.extract_strided_slice %211 {offsets = [0, 8], sizes = [16, 8], strides = [1, 1]} : vector<16x32xf32> to vector<16x8xf32>
    %cst_104 = arith.constant dense<0.000000e+00> : vector<16x16xf32>
    %239 = tpu.matmul %237, %238, %cst_104 {dimension_numbers = #tpu.dot_dimension_numbers<[1], [1], [0], [0], [0, 0, 1, 0], [], []>} : vector<16x8xf32>, vector<16x8xf32>, vector<16x16xf32> -> vector<16x16xf32>
    %cst_105 = arith.constant 0.353553385 : f32
    %240 = vector.broadcast %cst_105 : f32 to vector<16x16xf32>
    %241 = arith.mulf %239, %240 : vector<16x16xf32>
    %242 = arith.addf %241, %1 : vector<16x16xf32>
    %cst_106 = arith.constant dense<0xFF800000> : vector<16xf32>
    %243 = vector.multi_reduction <maximumf>, %242, %cst_106 [1] : vector<16x16xf32> to vector<16xf32>
    %244 = vector.shape_cast %243 : vector<16xf32> to vector<16x1xf32>
    %245 = vector.broadcast %244 : vector<16x1xf32> to vector<16x16xf32>
    %246 = arith.subf %242, %245 : vector<16x16xf32>
    %247 = math.exp %246 : vector<16x16xf32>
    %cst_107 = arith.constant dense<0.000000e+00> : vector<16xf32>
    %248 = vector.multi_reduction <add>, %247, %cst_107 [1] : vector<16x16xf32> to vector<16xf32>
    %249 = vector.shape_cast %248 : vector<16xf32> to vector<16x1xf32>
    %250 = tpu.reciprocal %249 {approx = true} : vector<16x1xf32> -> vector<16x1xf32>
    %251 = vector.broadcast %250 : vector<16x1xf32> to vector<16x16xf32>
    %252 = arith.mulf %247, %251 : vector<16x16xf32>
    %253 = vector.extract_strided_slice %212 {offsets = [0, 8], sizes = [16, 8], strides = [1, 1]} : vector<16x32xf32> to vector<16x8xf32>
    %cst_108 = arith.constant dense<0.000000e+00> : vector<16x8xf32>
    %254 = tpu.matmul %252, %253, %cst_108 {dimension_numbers = #tpu.dot_dimension_numbers<[1], [0], [0], [1], [0, 0, 1, 1], [], []>} : vector<16x16xf32>, vector<16x8xf32>, vector<16x8xf32> -> vector<16x8xf32>
    %255 = vector.extract_strided_slice %214 {offsets = [8, 0], sizes = [8, 32], strides = [1, 1]} : vector<32x32xf32> to vector<8x32xf32>
    %cst_109 = arith.constant dense<0.000000e+00> : vector<16x32xf32>
    %256 = tpu.matmul %254, %255, %cst_109 {dimension_numbers = #tpu.dot_dimension_numbers<[1], [0], [0], [1], [0, 0, 1, 1], [], []>} : vector<16x8xf32>, vector<8x32xf32>, vector<16x32xf32> -> vector<16x32xf32>
    %257 = arith.addf %236, %256 : vector<16x32xf32>
    %258 = vector.extract_strided_slice %210 {offsets = [0, 16], sizes = [16, 8], strides = [1, 1]} : vector<16x32xf32> to vector<16x8xf32>
    %259 = vector.extract_strided_slice %211 {offsets = [0, 16], sizes = [16, 8], strides = [1, 1]} : vector<16x32xf32> to vector<16x8xf32>
    %cst_110 = arith.constant dense<0.000000e+00> : vector<16x16xf32>
    %260 = tpu.matmul %258, %259, %cst_110 {dimension_numbers = #tpu.dot_dimension_numbers<[1], [1], [0], [0], [0, 0, 1, 0], [], []>} : vector<16x8xf32>, vector<16x8xf32>, vector<16x16xf32> -> vector<16x16xf32>
    %cst_111 = arith.constant 0.353553385 : f32
    %261 = vector.broadcast %cst_111 : f32 to vector<16x16xf32>
    %262 = arith.mulf %260, %261 : vector<16x16xf32>
    %263 = arith.addf %262, %1 : vector<16x16xf32>
    %cst_112 = arith.constant dense<0xFF800000> : vector<16xf32>
    %264 = vector.multi_reduction <maximumf>, %263, %cst_112 [1] : vector<16x16xf32> to vector<16xf32>
    %265 = vector.shape_cast %264 : vector<16xf32> to vector<16x1xf32>
    %266 = vector.broadcast %265 : vector<16x1xf32> to vector<16x16xf32>
    %267 = arith.subf %263, %266 : vector<16x16xf32>
    %268 = math.exp %267 : vector<16x16xf32>
    %cst_113 = arith.constant dense<0.000000e+00> : vector<16xf32>
    %269 = vector.multi_reduction <add>, %268, %cst_113 [1] : vector<16x16xf32> to vector<16xf32>
    %270 = vector.shape_cast %269 : vector<16xf32> to vector<16x1xf32>
    %271 = tpu.reciprocal %270 {approx = true} : vector<16x1xf32> -> vector<16x1xf32>
    %272 = vector.broadcast %271 : vector<16x1xf32> to vector<16x16xf32>
    %273 = arith.mulf %268, %272 : vector<16x16xf32>
    %274 = vector.extract_strided_slice %212 {offsets = [0, 16], sizes = [16, 8], strides = [1, 1]} : vector<16x32xf32> to vector<16x8xf32>
    %cst_114 = arith.constant dense<0.000000e+00> : vector<16x8xf32>
    %275 = tpu.matmul %273, %274, %cst_114 {dimension_numbers = #tpu.dot_dimension_numbers<[1], [0], [0], [1], [0, 0, 1, 1], [], []>} : vector<16x16xf32>, vector<16x8xf32>, vector<16x8xf32> -> vector<16x8xf32>
    %276 = vector.extract_strided_slice %214 {offsets = [16, 0], sizes = [8, 32], strides = [1, 1]} : vector<32x32xf32> to vector<8x32xf32>
    %cst_115 = arith.constant dense<0.000000e+00> : vector<16x32xf32>
    %277 = tpu.matmul %275, %276, %cst_115 {dimension_numbers = #tpu.dot_dimension_numbers<[1], [0], [0], [1], [0, 0, 1, 1], [], []>} : vector<16x8xf32>, vector<8x32xf32>, vector<16x32xf32> -> vector<16x32xf32>
    %278 = arith.addf %257, %277 : vector<16x32xf32>
    %279 = vector.extract_strided_slice %210 {offsets = [0, 24], sizes = [16, 8], strides = [1, 1]} : vector<16x32xf32> to vector<16x8xf32>
    %280 = vector.extract_strided_slice %211 {offsets = [0, 24], sizes = [16, 8], strides = [1, 1]} : vector<16x32xf32> to vector<16x8xf32>
    %cst_116 = arith.constant dense<0.000000e+00> : vector<16x16xf32>
    %281 = tpu.matmul %279, %280, %cst_116 {dimension_numbers = #tpu.dot_dimension_numbers<[1], [1], [0], [0], [0, 0, 1, 0], [], []>} : vector<16x8xf32>, vector<16x8xf32>, vector<16x16xf32> -> vector<16x16xf32>
    %cst_117 = arith.constant 0.353553385 : f32
    %282 = vector.broadcast %cst_117 : f32 to vector<16x16xf32>
    %283 = arith.mulf %281, %282 : vector<16x16xf32>
    %284 = arith.addf %283, %1 : vector<16x16xf32>
    %cst_118 = arith.constant dense<0xFF800000> : vector<16xf32>
    %285 = vector.multi_reduction <maximumf>, %284, %cst_118 [1] : vector<16x16xf32> to vector<16xf32>
    %286 = vector.shape_cast %285 : vector<16xf32> to vector<16x1xf32>
    %287 = vector.broadcast %286 : vector<16x1xf32> to vector<16x16xf32>
    %288 = arith.subf %284, %287 : vector<16x16xf32>
    %289 = math.exp %288 : vector<16x16xf32>
    %cst_119 = arith.constant dense<0.000000e+00> : vector<16xf32>
    %290 = vector.multi_reduction <add>, %289, %cst_119 [1] : vector<16x16xf32> to vector<16xf32>
    %291 = vector.shape_cast %290 : vector<16xf32> to vector<16x1xf32>
    %292 = tpu.reciprocal %291 {approx = true} : vector<16x1xf32> -> vector<16x1xf32>
    %293 = vector.broadcast %292 : vector<16x1xf32> to vector<16x16xf32>
    %294 = arith.mulf %289, %293 : vector<16x16xf32>
    %295 = vector.extract_strided_slice %212 {offsets = [0, 24], sizes = [16, 8], strides = [1, 1]} : vector<16x32xf32> to vector<16x8xf32>
    %cst_120 = arith.constant dense<0.000000e+00> : vector<16x8xf32>
    %296 = tpu.matmul %294, %295, %cst_120 {dimension_numbers = #tpu.dot_dimension_numbers<[1], [0], [0], [1], [0, 0, 1, 1], [], []>} : vector<16x16xf32>, vector<16x8xf32>, vector<16x8xf32> -> vector<16x8xf32>
    %297 = vector.extract_strided_slice %214 {offsets = [24, 0], sizes = [8, 32], strides = [1, 1]} : vector<32x32xf32> to vector<8x32xf32>
    %cst_121 = arith.constant dense<0.000000e+00> : vector<16x32xf32>
    %298 = tpu.matmul %296, %297, %cst_121 {dimension_numbers = #tpu.dot_dimension_numbers<[1], [0], [0], [1], [0, 0, 1, 1], [], []>} : vector<16x8xf32>, vector<8x32xf32>, vector<16x32xf32> -> vector<16x32xf32>
    %299 = arith.addf %278, %298 : vector<16x32xf32>
    %c1_122 = arith.constant 1 : index
    %c0_123 = arith.constant 0 : index
    %c0_124 = arith.constant 0 : index
    %300 = vector.load %arg8[%c1_122, %c0_123, %c0_124] : memref<2x1x32xf32, #tpu.memory_space<vmem>>, vector<1x1x32xf32>
    %301 = vector.shape_cast %300 : vector<1x1x32xf32> to vector<1x32xf32>
    %302 = vector.broadcast %301 : vector<1x32xf32> to vector<16x32xf32>
    %303 = arith.addf %299, %302 : vector<16x32xf32>
    %304 = arith.addf %303, %202 : vector<16x32xf32>
    %c1_125 = arith.constant 1 : index
    %c0_126 = arith.constant 0 : index
    %c0_127 = arith.constant 0 : index
    %305 = vector.load %arg9[%c1_125, %c0_126, %c0_127] : memref<2x1x32xf32, #tpu.memory_space<vmem>>, vector<1x1x32xf32>
    %306 = vector.shape_cast %305 : vector<1x1x32xf32> to vector<1x32xf32>
    %c1_128 = arith.constant 1 : index
    %c0_129 = arith.constant 0 : index
    %c0_130 = arith.constant 0 : index
    %307 = vector.load %arg10[%c1_128, %c0_129, %c0_130] : memref<2x1x32xf32, #tpu.memory_space<vmem>>, vector<1x1x32xf32>
    %308 = vector.shape_cast %307 : vector<1x1x32xf32> to vector<1x32xf32>
    %cst_131 = arith.constant dense<0.000000e+00> : vector<16xf32>
    %309 = vector.multi_reduction <add>, %304, %cst_131 [1] : vector<16x32xf32> to vector<16xf32>
    %310 = vector.shape_cast %309 : vector<16xf32> to vector<16x1xf32>
    %cst_132 = arith.constant 3.200000e+01 : f32
    %311 = vector.broadcast %cst_132 : f32 to vector<16x1xf32>
    %312 = arith.divf %310, %311 : vector<16x1xf32>
    %313 = vector.broadcast %312 : vector<16x1xf32> to vector<16x32xf32>
    %314 = arith.subf %304, %313 : vector<16x32xf32>
    %315 = arith.mulf %314, %314 : vector<16x32xf32>
    %cst_133 = arith.constant dense<0.000000e+00> : vector<16xf32>
    %316 = vector.multi_reduction <add>, %315, %cst_133 [1] : vector<16x32xf32> to vector<16xf32>
    %317 = vector.shape_cast %316 : vector<16xf32> to vector<16x1xf32>
    %cst_134 = arith.constant 3.200000e+01 : f32
    %318 = vector.broadcast %cst_134 : f32 to vector<16x1xf32>
    %319 = arith.divf %317, %318 : vector<16x1xf32>
    %320 = vector.broadcast %312 : vector<16x1xf32> to vector<16x32xf32>
    %321 = arith.subf %304, %320 : vector<16x32xf32>
    %cst_135 = arith.constant 9.99999996E-13 : f32
    %322 = vector.broadcast %cst_135 : f32 to vector<16x1xf32>
    %323 = arith.addf %319, %322 : vector<16x1xf32>
    %324 = math.rsqrt %323 : vector<16x1xf32>
    %325 = vector.broadcast %324 : vector<16x1xf32> to vector<16x32xf32>
    %326 = arith.mulf %321, %325 : vector<16x32xf32>
    %327 = vector.broadcast %306 : vector<1x32xf32> to vector<16x32xf32>
    %328 = arith.mulf %326, %327 : vector<16x32xf32>
    %329 = vector.broadcast %308 : vector<1x32xf32> to vector<16x32xf32>
    %330 = arith.addf %328, %329 : vector<16x32xf32>
    %c1_136 = arith.constant 1 : index
    %c0_137 = arith.constant 0 : index
    %c0_138 = arith.constant 0 : index
    %331 = vector.load %arg11[%c1_136, %c0_137, %c0_138] : memref<2x32x64xf32, #tpu.memory_space<vmem>>, vector<1x32x64xf32>
    %332 = vector.shape_cast %331 : vector<1x32x64xf32> to vector<32x64xf32>
    %cst_139 = arith.constant dense<0.000000e+00> : vector<16x64xf32>
    %333 = tpu.matmul %330, %332, %cst_139 {dimension_numbers = #tpu.dot_dimension_numbers<[1], [0], [0], [1], [0, 0, 1, 1], [], []>} : vector<16x32xf32>, vector<32x64xf32>, vector<16x64xf32> -> vector<16x64xf32>
    %c1_140 = arith.constant 1 : index
    %c0_141 = arith.constant 0 : index
    %c0_142 = arith.constant 0 : index
    %334 = vector.load %arg12[%c1_140, %c0_141, %c0_142] : memref<2x1x64xf32, #tpu.memory_space<vmem>>, vector<1x1x64xf32>
    %335 = vector.shape_cast %334 : vector<1x1x64xf32> to vector<1x64xf32>
    %336 = vector.broadcast %335 : vector<1x64xf32> to vector<16x64xf32>
    %337 = arith.addf %333, %336 : vector<16x64xf32>
    %cst_143 = arith.constant 5.000000e-01 : f32
    %338 = vector.broadcast %cst_143 : f32 to vector<16x64xf32>
    %339 = arith.mulf %338, %337 : vector<16x64xf32>
    %cst_144 = arith.constant 0.707106769 : f32
    %340 = vector.broadcast %cst_144 : f32 to vector<16x64xf32>
    %341 = arith.mulf %337, %340 : vector<16x64xf32>
    %342 = math.erf %341 : vector<16x64xf32>
    %cst_145 = arith.constant 1.000000e+00 : f32
    %343 = vector.broadcast %cst_145 : f32 to vector<16x64xf32>
    %344 = arith.addf %343, %342 : vector<16x64xf32>
    %345 = arith.mulf %339, %344 : vector<16x64xf32>
    %c1_146 = arith.constant 1 : index
    %c0_147 = arith.constant 0 : index
    %c0_148 = arith.constant 0 : index
    %346 = vector.load %arg13[%c1_146, %c0_147, %c0_148] : memref<2x64x32xf32, #tpu.memory_space<vmem>>, vector<1x64x32xf32>
    %347 = vector.shape_cast %346 : vector<1x64x32xf32> to vector<64x32xf32>
    %cst_149 = arith.constant dense<0.000000e+00> : vector<16x32xf32>
    %348 = tpu.matmul %345, %347, %cst_149 {dimension_numbers = #tpu.dot_dimension_numbers<[1], [0], [0], [1], [0, 0, 1, 1], [], []>} : vector<16x64xf32>, vector<64x32xf32>, vector<16x32xf32> -> vector<16x32xf32>
    %c1_150 = arith.constant 1 : index
    %c0_151 = arith.constant 0 : index
    %c0_152 = arith.constant 0 : index
    %349 = vector.load %arg14[%c1_150, %c0_151, %c0_152] : memref<2x1x32xf32, #tpu.memory_space<vmem>>, vector<1x1x32xf32>
    %350 = vector.shape_cast %349 : vector<1x1x32xf32> to vector<1x32xf32>
    %351 = vector.broadcast %350 : vector<1x32xf32> to vector<16x32xf32>
    %352 = arith.addf %348, %351 : vector<16x32xf32>
    %353 = arith.addf %352, %330 : vector<16x32xf32>
    %c1_153 = arith.constant 1 : index
    %c0_154 = arith.constant 0 : index
    %c0_155 = arith.constant 0 : index
    %354 = vector.load %arg15[%c1_153, %c0_154, %c0_155] : memref<2x1x32xf32, #tpu.memory_space<vmem>>, vector<1x1x32xf32>
    %355 = vector.shape_cast %354 : vector<1x1x32xf32> to vector<1x32xf32>
    %c1_156 = arith.constant 1 : index
    %c0_157 = arith.constant 0 : index
    %c0_158 = arith.constant 0 : index
    %356 = vector.load %arg16[%c1_156, %c0_157, %c0_158] : memref<2x1x32xf32, #tpu.memory_space<vmem>>, vector<1x1x32xf32>
    %357 = vector.shape_cast %356 : vector<1x1x32xf32> to vector<1x32xf32>
    %cst_159 = arith.constant dense<0.000000e+00> : vector<16xf32>
    %358 = vector.multi_reduction <add>, %353, %cst_159 [1] : vector<16x32xf32> to vector<16xf32>
    %359 = vector.shape_cast %358 : vector<16xf32> to vector<16x1xf32>
    %cst_160 = arith.constant 3.200000e+01 : f32
    %360 = vector.broadcast %cst_160 : f32 to vector<16x1xf32>
    %361 = arith.divf %359, %360 : vector<16x1xf32>
    %362 = vector.broadcast %361 : vector<16x1xf32> to vector<16x32xf32>
    %363 = arith.subf %353, %362 : vector<16x32xf32>
    %364 = arith.mulf %363, %363 : vector<16x32xf32>
    %cst_161 = arith.constant dense<0.000000e+00> : vector<16xf32>
    %365 = vector.multi_reduction <add>, %364, %cst_161 [1] : vector<16x32xf32> to vector<16xf32>
    %366 = vector.shape_cast %365 : vector<16xf32> to vector<16x1xf32>
    %cst_162 = arith.constant 3.200000e+01 : f32
    %367 = vector.broadcast %cst_162 : f32 to vector<16x1xf32>
    %368 = arith.divf %366, %367 : vector<16x1xf32>
    %369 = vector.broadcast %361 : vector<16x1xf32> to vector<16x32xf32>
    %370 = arith.subf %353, %369 : vector<16x32xf32>
    %cst_163 = arith.constant 9.99999996E-13 : f32
    %371 = vector.broadcast %cst_163 : f32 to vector<16x1xf32>
    %372 = arith.addf %368, %371 : vector<16x1xf32>
    %373 = math.rsqrt %372 : vector<16x1xf32>
    %374 = vector.broadcast %373 : vector<16x1xf32> to vector<16x32xf32>
    %375 = arith.mulf %370, %374 : vector<16x32xf32>
    %376 = vector.broadcast %355 : vector<1x32xf32> to vector<16x32xf32>
    %377 = arith.mulf %375, %376 : vector<16x32xf32>
    %378 = vector.broadcast %357 : vector<1x32xf32> to vector<16x32xf32>
    %379 = arith.addf %377, %378 : vector<16x32xf32>
    %c0_164 = arith.constant 0 : index
    %c0_165 = arith.constant 0 : index
    %380 = vector.load %arg17[%c0_164, %c0_165] : memref<32x12xf32, #tpu.memory_space<vmem>>, vector<32x12xf32>
    %cst_166 = arith.constant dense<0.000000e+00> : vector<16x12xf32>
    %381 = tpu.matmul %379, %380, %cst_166 {dimension_numbers = #tpu.dot_dimension_numbers<[1], [0], [0], [1], [0, 0, 1, 1], [], []>} : vector<16x32xf32>, vector<32x12xf32>, vector<16x12xf32> -> vector<16x12xf32>
    %c0_167 = arith.constant 0 : index
    %c0_168 = arith.constant 0 : index
    %382 = vector.load %arg18[%c0_167, %c0_168] : memref<1x12xf32, #tpu.memory_space<vmem>>, vector<1x12xf32>
    %383 = vector.broadcast %382 : vector<1x12xf32> to vector<16x12xf32>
    %384 = arith.addf %381, %383 : vector<16x12xf32>
    %c0_169 = arith.constant 0 : index
    %c0_170 = arith.constant 0 : index
    %385 = vector.load %arg19[%c0_169, %c0_170] : memref<16x12xf32, #tpu.memory_space<vmem>>, vector<16x12xf32>
    tpu.vector_store %arg19[%c0_169, %c0_170], %384 {strides = array<i32>} : memref<16x12xf32, #tpu.memory_space<vmem>>, vector<16x12xf32>,
    return
  }
  func.func @transform_0(%arg0: i32) -> (i32, i32) {
    %c0_i32 = arith.constant 0 : i32
    %c0_i32_0 = arith.constant 0 : i32
    %c0_i32_1 = arith.constant 0 : i32
    return %c0_i32, %c0_i32_0 : i32, i32
  }
  func.func @transform_1(%arg0: i32) -> (i32, i32) {
    %c0_i32 = arith.constant 0 : i32
    %c0_i32_0 = arith.constant 0 : i32
    %c0_i32_1 = arith.constant 0 : i32
    return %c0_i32, %c0_i32_0 : i32, i32
  }
  func.func @transform_2(%arg0: i32) -> (i32, i32) {
    %c0_i32 = arith.constant 0 : i32
    %c0_i32_0 = arith.constant 0 : i32
    %c0_i32_1 = arith.constant 0 : i32
    return %c0_i32, %c0_i32_0 : i32, i32
  }
  func.func @transform_3(%arg0: i32) -> (i32, i32) {
    %c0_i32 = arith.constant 0 : i32
    %c0_i32_0 = arith.constant 0 : i32
    %c0_i32_1 = arith.constant 0 : i32
    return %c0_i32, %c0_i32_0 : i32, i32
  }
  func.func @transform_4(%arg0: i32) -> (i32, i32, i32) {
    %c0_i32 = arith.constant 0 : i32
    %c0_i32_0 = arith.constant 0 : i32
    %c0_i32_1 = arith.constant 0 : i32
    %c0_i32_2 = arith.constant 0 : i32
    return %c0_i32, %c0_i32_0, %c0_i32_1 : i32, i32, i32
  }
  func.func @transform_5(%arg0: i32) -> (i32, i32, i32) {
    %c0_i32 = arith.constant 0 : i32
    %c0_i32_0 = arith.constant 0 : i32
    %c0_i32_1 = arith.constant 0 : i32
    %c0_i32_2 = arith.constant 0 : i32
    return %c0_i32, %c0_i32_0, %c0_i32_1 : i32, i32, i32
  }
  func.func @transform_6(%arg0: i32) -> (i32, i32, i32) {
    %c0_i32 = arith.constant 0 : i32
    %c0_i32_0 = arith.constant 0 : i32
    %c0_i32_1 = arith.constant 0 : i32
    %c0_i32_2 = arith.constant 0 : i32
    return %c0_i32, %c0_i32_0, %c0_i32_1 : i32, i32, i32
  }
  func.func @transform_7(%arg0: i32) -> (i32, i32, i32) {
    %c0_i32 = arith.constant 0 : i32
    %c0_i32_0 = arith.constant 0 : i32
    %c0_i32_1 = arith.constant 0 : i32
    %c0_i32_2 = arith.constant 0 : i32
    return %c0_i32, %c0_i32_0, %c0_i32_1 : i32, i32, i32
  }
  func.func @transform_8(%arg0: i32) -> (i32, i32, i32) {
    %c0_i32 = arith.constant 0 : i32
    %c0_i32_0 = arith.constant 0 : i32
    %c0_i32_1 = arith.constant 0 : i32
    %c0_i32_2 = arith.constant 0 : i32
    return %c0_i32, %c0_i32_0, %c0_i32_1 : i32, i32, i32
  }
  func.func @transform_9(%arg0: i32) -> (i32, i32, i32) {
    %c0_i32 = arith.constant 0 : i32
    %c0_i32_0 = arith.constant 0 : i32
    %c0_i32_1 = arith.constant 0 : i32
    %c0_i32_2 = arith.constant 0 : i32
    return %c0_i32, %c0_i32_0, %c0_i32_1 : i32, i32, i32
  }
  func.func @transform_10(%arg0: i32) -> (i32, i32, i32) {
    %c0_i32 = arith.constant 0 : i32
    %c0_i32_0 = arith.constant 0 : i32
    %c0_i32_1 = arith.constant 0 : i32
    %c0_i32_2 = arith.constant 0 : i32
    return %c0_i32, %c0_i32_0, %c0_i32_1 : i32, i32, i32
  }
  func.func @transform_11(%arg0: i32) -> (i32, i32, i32) {
    %c0_i32 = arith.constant 0 : i32
    %c0_i32_0 = arith.constant 0 : i32
    %c0_i32_1 = arith.constant 0 : i32
    %c0_i32_2 = arith.constant 0 : i32
    return %c0_i32, %c0_i32_0, %c0_i32_1 : i32, i32, i32
  }
  func.func @transform_12(%arg0: i32) -> (i32, i32, i32) {
    %c0_i32 = arith.constant 0 : i32
    %c0_i32_0 = arith.constant 0 : i32
    %c0_i32_1 = arith.constant 0 : i32
    %c0_i32_2 = arith.constant 0 : i32
    return %c0_i32, %c0_i32_0, %c0_i32_1 : i32, i32, i32
  }
  func.func @transform_13(%arg0: i32) -> (i32, i32, i32) {
    %c0_i32 = arith.constant 0 : i32
    %c0_i32_0 = arith.constant 0 : i32
    %c0_i32_1 = arith.constant 0 : i32
    %c0_i32_2 = arith.constant 0 : i32
    return %c0_i32, %c0_i32_0, %c0_i32_1 : i32, i32, i32
  }
  func.func @transform_14(%arg0: i32) -> (i32, i32, i32) {
    %c0_i32 = arith.constant 0 : i32
    %c0_i32_0 = arith.constant 0 : i32
    %c0_i32_1 = arith.constant 0 : i32
    %c0_i32_2 = arith.constant 0 : i32
    return %c0_i32, %c0_i32_0, %c0_i32_1 : i32, i32, i32
  }
  func.func @transform_15(%arg0: i32) -> (i32, i32, i32) {
    %c0_i32 = arith.constant 0 : i32
    %c0_i32_0 = arith.constant 0 : i32
    %c0_i32_1 = arith.constant 0 : i32
    %c0_i32_2 = arith.constant 0 : i32
    return %c0_i32, %c0_i32_0, %c0_i32_1 : i32, i32, i32
  }
  func.func @transform_16(%arg0: i32) -> (i32, i32) {
    %c0_i32 = arith.constant 0 : i32
    %c0_i32_0 = arith.constant 0 : i32
    %c0_i32_1 = arith.constant 0 : i32
    return %c0_i32, %c0_i32_0 : i32, i32
  }
  func.func @transform_17(%arg0: i32) -> (i32, i32) {
    %c0_i32 = arith.constant 0 : i32
    %c0_i32_0 = arith.constant 0 : i32
    %c0_i32_1 = arith.constant 0 : i32
    return %c0_i32, %c0_i32_0 : i32, i32
  }
  func.func @transform_18(%arg0: i32) -> (i32, i32) {
    %c0_i32 = arith.constant 0 : i32
    %c0_i32_0 = arith.constant 0 : i32
    %c0_i32_1 = arith.constant 0 : i32
    return %c0_i32, %c0_i32_0 : i32, i32
  }
}

</mosaic_0001>

<llo_original>
// kernel: aspect_classifier_forward.1
$region0: #{aspect_classifier_forward.1}
  #allocation0 [shape = 'u32[]', space=smem, size = 0x4, offset = 0x4, fixed_abs, tag = 'smem constant byte address 0x4 - core index']
  #allocation1 [shape = 'u32[72,128]{1,0:T(1,128)}', space=vmem, size = 0x9000, scoped, tag = 'internal scratch']
  %s0 = inlined_call_operand.vmem [shape: f32[16,32], index: 0, kind: input, shape index: {}]
  %s1 = inlined_call_operand.vmem [shape: f32[16,16], index: 1, kind: input, shape index: {}]
  %s2 = inlined_call_operand.vmem [shape: f32[1,32], index: 2, kind: input, shape index: {}]
  %s3 = inlined_call_operand.vmem [shape: f32[1,32], index: 3, kind: input, shape index: {}]
  %s4 = inlined_call_operand.vmem [shape: f32[2,32,96], index: 4, kind: input, shape index: {}]
  %s5 = inlined_call_operand.vmem [shape: f32[2,1,96], index: 5, kind: input, shape index: {}]
  %s6 = inlined_call_operand.vmem [shape: f32[2,32,32], index: 6, kind: input, shape index: {}]
  %s7 = inlined_call_operand.vmem [shape: f32[2,1,32], index: 7, kind: input, shape index: {}]
  %s8 = inlined_call_operand.vmem [shape: f32[2,1,32], index: 8, kind: input, shape index: {}]
  %s9 = inlined_call_operand.vmem [shape: f32[2,1,32], index: 9, kind: input, shape index: {}]
  %s10 = inlined_call_operand.vmem [shape: f32[2,32,64], index: 10, kind: input, shape index: {}]
  %s11 = inlined_call_operand.vmem [shape: f32[2,1,64], index: 11, kind: input, shape index: {}]
  %s12 = inlined_call_operand.vmem [shape: f32[2,64,32], index: 12, kind: input, shape index: {}]
  %s13 = inlined_call_operand.vmem [shape: f32[2,1,32], index: 13, kind: input, shape index: {}]
  %s14 = inlined_call_operand.vmem [shape: f32[2,1,32], index: 14, kind: input, shape index: {}]
  %s15 = inlined_call_operand.vmem [shape: f32[2,1,32], index: 15, kind: input, shape index: {}]
  %s16 = inlined_call_operand.vmem [shape: f32[32,12], index: 16, kind: input, shape index: {}]
  %s17 = inlined_call_operand.vmem [shape: f32[1,12], index: 17, kind: input, shape index: {}]
  %s18 = inlined_call_operand.vmem [shape: f32[16,12], index: 18, kind: output, shape index: {}]
  %s19 = sld [smem:[#allocation0]]
  $region82: #{aspect_classifier_forward.1} parent=0
    _
  %s21 = ssub.s32 1, %s19
  %s22 = scalar_select 0, %s21, %s19
  // Predicated region
  $region2: #{aspect_classifier_forward.1} parent=0 // pred_check
    _
  $region3: #{aspect_classifier_forward.1} parent=0 // pred_check_branch
    %24 = sbr.rel (0) target = $region5
  $region4: #{aspect_classifier_forward.1} parent=0 // pred_region
    _
  $region5: #{aspect_classifier_forward.1} parent=0 // pred_fallthru
    _
  // Predicated region
  $region6: #{aspect_classifier_forward.1} parent=0 // pred_check
    _
  $region7: #{aspect_classifier_forward.1} parent=0 // pred_check_branch
    %26 = sbr.rel (0) target = $region9
  $region8: #{aspect_classifier_forward.1} parent=0 // pred_region
    _
  $region9: #{aspect_classifier_forward.1} parent=0 // pred_fallthru
    _
  // Predicated region
  $region10: #{aspect_classifier_forward.1} parent=0 // pred_check
    _
  $region11: #{aspect_classifier_forward.1} parent=0 // pred_check_branch
    %28 = sbr.rel (0) target = $region13
  $region12: #{aspect_classifier_forward.1} parent=0 // pred_region
    _
  $region13: #{aspect_classifier_forward.1} parent=0 // pred_fallthru
    _
  // Predicated region
  $region14: #{aspect_classifier_forward.1} parent=0 // pred_check
    _
  $region15: #{aspect_classifier_forward.1} parent=0 // pred_check_branch
    %30 = sbr.rel (0) target = $region17
  $region16: #{aspect_classifier_forward.1} parent=0 // pred_region
    _
  $region17: #{aspect_classifier_forward.1} parent=0 // pred_fallthru
    _
  // Predicated region
  $region18: #{aspect_classifier_forward.1} parent=0 // pred_check
    _
  $region19: #{aspect_classifier_forward.1} parent=0 // pred_check_branch
    %32 = sbr.rel (0) target = $region21
  $region20: #{aspect_classifier_forward.1} parent=0 // pred_region
    _
  $region21: #{aspect_classifier_forward.1} parent=0 // pred_fallthru
    _
  // Predicated region
  $region22: #{aspect_classifier_forward.1} parent=0 // pred_check
    _
  $region23: #{aspect_classifier_forward.1} parent=0 // pred_check_branch
    %34 = sbr.rel (0) target = $region25
  $region24: #{aspect_classifier_forward.1} parent=0 // pred_region
    _
  $region25: #{aspect_classifier_forward.1} parent=0 // pred_fallthru
    _
  // Predicated region
  $region26: #{aspect_classifier_forward.1} parent=0 // pred_check
    _
  $region27: #{aspect_classifier_forward.1} parent=0 // pred_check_branch
    %36 = sbr.rel (0) target = $region29
  $region28: #{aspect_classifier_forward.1} parent=0 // pred_region
    _
  $region29: #{aspect_classifier_forward.1} parent=0 // pred_fallthru
    _
  // Predicated region
  $region30: #{aspect_classifier_forward.1} parent=0 // pred_check
    _
  $region31: #{aspect_classifier_forward.1} parent=0 // pred_check_branch
    %38 = sbr.rel (0) target = $region33
  $region32: #{aspect_classifier_forward.1} parent=0 // pred_region
    _
  $region33: #{aspect_classifier_forward.1} parent=0 // pred_fallthru
    _
  // Predicated region
  $region34: #{aspect_classifier_forward.1} parent=0 // pred_check
    _
  $region35: #{aspect_classifier_forward.1} parent=0 // pred_check_branch
    %40 = sbr.rel (0) target = $region37
  $region36: #{aspect_classifier_forward.1} parent=0 // pred_region
    _
  $region37: #{aspect_classifier_forward.1} parent=0 // pred_fallthru
    _
  // Predicated region
  $region38: #{aspect_classifier_forward.1} parent=0 // pred_check
    _
  $region39: #{aspect_classifier_forward.1} parent=0 // pred_check_branch
    %42 = sbr.rel (0) target = $region41
  $region40: #{aspect_classifier_forward.1} parent=0 // pred_region
    _
  $region41: #{aspect_classifier_forward.1} parent=0 // pred_fallthru
    _
  // Predicated region
  $region42: #{aspect_classifier_forward.1} parent=0 // pred_check
    _
  $region43: #{aspect_classifier_forward.1} parent=0 // pred_check_branch
    %44 = sbr.rel (0) target = $region45
  $region44: #{aspect_classifier_forward.1} parent=0 // pred_region
    _
  $region45: #{aspect_classifier_forward.1} parent=0 // pred_fallthru
    _
  // Predicated region
  $region46: #{aspect_classifier_forward.1} parent=0 // pred_check
    _
  $region47: #{aspect_classifier_forward.1} parent=0 // pred_check_branch
    %46 = sbr.rel (0) target = $region49
  $region48: #{aspect_classifier_forward.1} parent=0 // pred_region
    _
  $region49: #{aspect_classifier_forward.1} parent=0 // pred_fallthru
    _
  // Predicated region
  $region50: #{aspect_classifier_forward.1} parent=0 // pred_check
    _
  $region51: #{aspect_classifier_forward.1} parent=0 // pred_check_branch
    %48 = sbr.rel (0) target = $region53
  $region52: #{aspect_classifier_forward.1} parent=0 // pred_region
    _
  $region53: #{aspect_classifier_forward.1} parent=0 // pred_fallthru
    _
  // Predicated region
  $region54: #{aspect_classifier_forward.1} parent=0 // pred_check
    _
  $region55: #{aspect_classifier_forward.1} parent=0 // pred_check_branch
    %50 = sbr.rel (0) target = $region57
  $region56: #{aspect_classifier_forward.1} parent=0 // pred_region
    _
  $region57: #{aspect_classifier_forward.1} parent=0 // pred_fallthru
    _
  // Predicated region
  $region58: #{aspect_classifier_forward.1} parent=0 // pred_check
    _
  $region59: #{aspect_classifier_forward.1} parent=0 // pred_check_branch
    %52 = sbr.rel (0) target = $region61
  $region60: #{aspect_classifier_forward.1} parent=0 // pred_region
    _
  $region61: #{aspect_classifier_forward.1} parent=0 // pred_fallthru
    _
  // Predicated region
  $region62: #{aspect_classifier_forward.1} parent=0 // pred_check
    _
  $region63: #{aspect_classifier_forward.1} parent=0 // pred_check_branch
    %54 = sbr.rel (0) target = $region65
  $region64: #{aspect_classifier_forward.1} parent=0 // pred_region
    _
  $region65: #{aspect_classifier_forward.1} parent=0 // pred_fallthru
    _
  // Predicated region
  $region66: #{aspect_classifier_forward.1} parent=0 // pred_check
    _
  $region67: #{aspect_classifier_forward.1} parent=0 // pred_check_branch
    %56 = sbr.rel (0) target = $region69
  $region68: #{aspect_classifier_forward.1} parent=0 // pred_region
    _
  $region69: #{aspect_classifier_forward.1} parent=0 // pred_fallthru
    _
  // Predicated region
  $region70: #{aspect_classifier_forward.1} parent=0 // pred_check
    _
  $region71: #{aspect_classifier_forward.1} parent=0 // pred_check_branch
    %58 = sbr.rel (0) target = $region73
  $region72: #{aspect_classifier_forward.1} parent=0 // pred_region
    _
  $region73: #{aspect_classifier_forward.1} parent=0 // pred_fallthru
    _
  %v59 = vld [vmem:[%s0] sm:$0xff]
  %v60 = vld [vmem:[%s0 + $0x8] sm:$0xff]
  %v61 = vld [vmem:[%s1] sm:$0xff]
  %v62 = vld [vmem:[%s1 + $0x8] sm:$0xff]
  %v63 = vld [vmem:[%s2] sm:$0x1]
  %v64 = vld [vmem:[%s3] sm:$0x1]
  %vm65 = vcmask 261120
  %v66 = vsel %vm65, %v59, 0.0
  %67 = vadd.xlane.f32.xlu0 %v66
  %v68 = vpop.xlane.xlu0 %67
  %v69 = vsel %vm65, %v60, 0.0
  %70 = vadd.xlane.f32.xlu0 %v69
  %v71 = vpop.xlane.xlu0 %70
  %v72 = vrcp.pop 32.0
  %v73 = vmul.f32 32.0, %v72
  %v74 = vsub.f32 1.0, %v73
  %v75 = vmul.f32 %v72, %v74
  %v76 = vadd.f32 %v72, %v75
  %vm77 = vweird.f32 %v72
  %v78 = vsel %vm77, %v72, %v76
  %v79 = vmul.f32 %v68, %v78
  %v80 = vmul.f32 %v71, %v78
  %v81 = vsub.f32 %v59, %v79
  %v82 = vsub.f32 %v60, %v80
  %v83 = vmul.f32 %v81, %v81
  %v84 = vmul.f32 %v82, %v82
  %v85 = vsel %vm65, %v83, 0.0
  %86 = vadd.xlane.f32.xlu0 %v85
  %v87 = vpop.xlane.xlu0 %86
  %v88 = vsel %vm65, %v84, 0.0
  %89 = vadd.xlane.f32.xlu0 %v88
  %v90 = vpop.xlane.xlu0 %89
  %v91 = vmul.f32 %v87, %v78
  %v92 = vmul.f32 %v90, %v78
  %v93 = vadd.f32 %v91, 1e-12
  %v94 = vadd.f32 %v92, 1e-12
  %v95 = vrsqrt.pop %v93
  %v96 = vmul.f32 %v95, %v93
  %v97 = vmul.f32 %v96, %v95
  %v98 = vmul.f32 0.5, %v97
  %v99 = vsub.f32 1.5, %v98
  %v100 = vmul.f32 %v95, %v99
  %vm101 = vweird.f32 %v93
  %vm102 = vweird.f32 %v95
  %vm103 = vmor %vm101, %vm102
  %v104 = vsel %vm103, %v95, %v100
  %v105 = vrsqrt.pop %v94
  %v106 = vmul.f32 %v105, %v94
  %v107 = vmul.f32 %v106, %v105
  %v108 = vmul.f32 0.5, %v107
  %v109 = vsub.f32 1.5, %v108
  %v110 = vmul.f32 %v105, %v109
  %vm111 = vweird.f32 %v94
  %vm112 = vweird.f32 %v105
  %vm113 = vmor %vm111, %vm112
  %v114 = vsel %vm113, %v105, %v110
  %v115 = vmul.f32 %v81, %v104
  %v116 = vmul.f32 %v82, %v114
  %v118 = vperm.slane %v63, 0
  %v120 = vmul.f32 %v115, %v118
  %v121 = vmul.f32 %v116, %v118
  %v123 = vperm.slane %v64, 0
  %v125 = vadd.f32 %v120, %v123
  %v126 = vadd.f32 %v121, %v123
  %v127 = vld [vmem:[%s4] sm:$0xff]
  %v128 = vld [vmem:[%s4 + $0x8] sm:$0xff]
  %v129 = vld [vmem:[%s4 + $0x10] sm:$0xff]
  %v130 = vld [vmem:[%s4 + $0x18] sm:$0xff]
  %v131 = vld [vmem:[%s5] sm:$0x1]
  %v133 = vperm.slane %v131, 0
  %v136 = vsel %vm65, %v125, 0
  %v139 = vsel %vm65, %v126, 0
  %141 = vmatpush.msra.mxu0 0.0
  %142 = vmatpush.msra.mxu0 0.0
  %143 = vmatpush.msra.mxu0 0.0
  %144 = vmatpush.msra.mxu0 0.0
  %145 = vmatpush.msra.mxu0 0.0
  %146 = vmatpush.msra.mxu0 0.0
  %147 = vmatpush.msra.mxu0 0.0
  %148 = vmatpush.msra.mxu0 0.0
  %149 = vmatpush.msra.mxu0 0.0
  %150 = vmatpush.msra.mxu0 0.0
  %151 = vmatpush.msra.mxu0 0.0
  %152 = vmatpush.msra.mxu0 0.0
  %153 = vmatpush.msra.mxu0 %v130
  %154 = vmatpush.msra.mxu0 %v129
  %155 = vmatpush.msra.mxu0 %v128
  %156 = vmatpush.msra.mxu0 %v127
  %157 = vmatmul.f32.gmra.mxu0 %v136
  %v158 = vpop.f32.mrf.mxu0
  %v159 = vadd.f32 %v133, %v158
  %160 = vmatmul.f32.gmra.mxu0 %v139
  %v161 = vpop.f32.mrf.mxu0
  %v162 = vadd.f32 %v133, %v161
  %163 = vdwg.mxu0
  %v164 = vld [vmem:[%s6] sm:$0xff]
  %v165 = vld [vmem:[%s6 + $0x8] sm:$0xff]
  %v166 = vld [vmem:[%s6 + $0x10] sm:$0xff]
  %v167 = vld [vmem:[%s6 + $0x18] sm:$0xff]
  %170 = vrot.lane.b32.xlu0 %v159, 96
  %v171 = vpop.permute.xlu0 %170
  %172 = vrot.lane.b32.xlu0 %v162, 96
  %v173 = vpop.permute.xlu0 %172
  %vm174 = vcmask 64512
  %v175 = vsel %vm174, %v159, 0
  %v177 = vsel %vm174, %v162, 0
  %v179 = vsel %vm174, %v171, 0
  %v181 = vsel %vm174, %v173, 0
  %183 = vmatpush.xpose.msra.mxu0 0.0
  %184 = vmatpush.xpose.msra.mxu0 0.0
  %185 = vmatpush.xpose.msra.mxu0 0.0
  %186 = vmatpush.xpose.msra.mxu0 0.0
  %187 = vmatpush.xpose.msra.mxu0 0.0
  %188 = vmatpush.xpose.msra.mxu0 0.0
  %189 = vmatpush.xpose.msra.mxu0 0.0
  %190 = vmatpush.xpose.msra.mxu0 0.0
  %191 = vmatpush.xpose.msra.mxu0 0.0
  %192 = vmatpush.xpose.msra.mxu0 0.0
  %193 = vmatpush.xpose.msra.mxu0 0.0
  %194 = vmatpush.xpose.msra.mxu0 0.0
  %195 = vmatpush.xpose.msra.mxu0 0.0
  %196 = vmatpush.xpose.msra.mxu0 0.0
  %197 = vmatpush.xpose.msra.mxu0 %v181
  %198 = vmatpush.xpose.msra.mxu0 %v179
  %199 = vmatmul.f32.gmra.mxu0 %v175
  %v200 = vpop.f32.mrf.mxu0
  %v201 = vadd.f32 0.0, %v200
  %202 = vmatmul.f32.gmra.mxu0 %v177
  %v203 = vpop.f32.mrf.mxu0
  %v204 = vadd.f32 0.0, %v203
  %205 = vdwg.mxu0
  %v206 = vmul.f32 %v201, 0.35355338
  %v207 = vmul.f32 %v204, 0.35355338
  %v208 = vadd.f32 %v206, %v61
  %v209 = vadd.f32 %v207, %v62
  %vm210 = vcmask 130048
  %v211 = vsel %vm210, %v208, -inf
  %212 = vmax.xlane.f32.xlu0 %v211
  %v213 = vpop.xlane.xlu0 %212
  %v214 = vsel %vm210, %v209, -inf
  %215 = vmax.xlane.f32.xlu0 %v214
  %v216 = vpop.xlane.xlu0 %215
  %v217 = vsub.f32 %v208, %v213
  %v218 = vsub.f32 %v209, %v216
  %v219 = vmul.f32 %v217, 1.442695
  %v220 = vpow.pop %v219
  %v221 = vmul.f32 %v218, 1.442695
  %v222 = vpow.pop %v221
  %v223 = vsel %vm210, %v220, 0.0
  %224 = vadd.xlane.f32.xlu0 %v223
  %v225 = vpop.xlane.xlu0 %224
  %v226 = vsel %vm210, %v222, 0.0
  %227 = vadd.xlane.f32.xlu0 %v226
  %v228 = vpop.xlane.xlu0 %227
  %v229 = vrcp.pop %v225
  %v230 = vrcp.pop %v228
  %v231 = vmul.f32 %v220, %v229
  %v232 = vmul.f32 %v222, %v230
  %233 = vrot.lane.b32.xlu0 %v159, 64
  %v234 = vpop.permute.xlu0 %233
  %235 = vrot.lane.b32.xlu0 %v162, 64
  %v236 = vpop.permute.xlu0 %235
  %v240 = vsel %vm210, %v231, 0
  %v243 = vsel %vm210, %v232, 0
  %245 = vmatpush.msra.mxu0 0.0
  %246 = vmatpush.msra.mxu0 0.0
  %247 = vmatpush.msra.mxu0 0.0
  %248 = vmatpush.msra.mxu0 0.0
  %249 = vmatpush.msra.mxu0 0.0
  %250 = vmatpush.msra.mxu0 0.0
  %251 = vmatpush.msra.mxu0 0.0
  %252 = vmatpush.msra.mxu0 0.0
  %253 = vmatpush.msra.mxu0 0.0
  %254 = vmatpush.msra.mxu0 0.0
  %255 = vmatpush.msra.mxu0 0.0
  %256 = vmatpush.msra.mxu0 0.0
  %257 = vmatpush.msra.mxu0 0.0
  %258 = vmatpush.msra.mxu0 0.0
  %259 = vmatpush.msra.mxu0 %v236
  %260 = vmatpush.msra.mxu0 %v234
  %261 = vmatmul.f32.gmra.mxu0 %v240
  %v262 = vpop.f32.mrf.mxu0
  %v263 = vadd.f32 0.0, %v262
  %264 = vmatmul.f32.gmra.mxu0 %v243
  %v265 = vpop.f32.mrf.mxu0
  %v266 = vadd.f32 0.0, %v265
  %267 = vdwg.mxu0
  %268 = vrot.lane.b32.xlu0 %v159, 120
  %v269 = vpop.permute.xlu0 %268
  %270 = vrot.lane.b32.xlu0 %v162, 120
  %v271 = vpop.permute.xlu0 %270
  %272 = vrot.lane.b32.xlu0 %v159, 88
  %v273 = vpop.permute.xlu0 %272
  %274 = vrot.lane.b32.xlu0 %v162, 88
  %v275 = vpop.permute.xlu0 %274
  %v276 = vsel %vm174, %v269, 0
  %v278 = vsel %vm174, %v271, 0
  %v280 = vsel %vm174, %v273, 0
  %v282 = vsel %vm174, %v275, 0
  %284 = vmatpush.xpose.msra.mxu0 0.0
  %285 = vmatpush.xpose.msra.mxu0 0.0
  %286 = vmatpush.xpose.msra.mxu0 0.0
  %287 = vmatpush.xpose.msra.mxu0 0.0
  %288 = vmatpush.xpose.msra.mxu0 0.0
  %289 = vmatpush.xpose.msra.mxu0 0.0
  %290 = vmatpush.xpose.msra.mxu0 0.0
  %291 = vmatpush.xpose.msra.mxu0 0.0
  %292 = vmatpush.xpose.msra.mxu0 0.0
  %293 = vmatpush.xpose.msra.mxu0 0.0
  %294 = vmatpush.xpose.msra.mxu0 0.0
  %295 = vmatpush.xpose.msra.mxu0 0.0
  %296 = vmatpush.xpose.msra.mxu0 0.0
  %297 = vmatpush.xpose.msra.mxu0 0.0
  %298 = vmatpush.xpose.msra.mxu0 %v282
  %299 = vmatpush.xpose.msra.mxu0 %v280
  %300 = vmatmul.f32.gmra.mxu0 %v276
  %v301 = vpop.f32.mrf.mxu0
  %v302 = vadd.f32 0.0, %v301
  %303 = vmatmul.f32.gmra.mxu0 %v278
  %v304 = vpop.f32.mrf.mxu0
  %v305 = vadd.f32 0.0, %v304
  %306 = vdwg.mxu0
  %v307 = vmul.f32 %v302, 0.35355338
  %v308 = vmul.f32 %v305, 0.35355338
  %v309 = vadd.f32 %v307, %v61
  %v310 = vadd.f32 %v308, %v62
  %v311 = vsel %vm210, %v309, -inf
  %312 = vmax.xlane.f32.xlu0 %v311
  %v313 = vpop.xlane.xlu0 %312
  %v314 = vsel %vm210, %v310, -inf
  %315 = vmax.xlane.f32.xlu0 %v314
  %v316 = vpop.xlane.xlu0 %315
  %v317 = vsub.f32 %v309, %v313
  %v318 = vsub.f32 %v310, %v316
  %v319 = vmul.f32 %v317, 1.442695
  %v320 = vpow.pop %v319
  %v321 = vmul.f32 %v318, 1.442695
  %v322 = vpow.pop %v321
  %v323 = vsel %vm210, %v320, 0.0
  %324 = vadd.xlane.f32.xlu0 %v323
  %v325 = vpop.xlane.xlu0 %324
  %v326 = vsel %vm210, %v322, 0.0
  %327 = vadd.xlane.f32.xlu0 %v326
  %v328 = vpop.xlane.xlu0 %327
  %v329 = vrcp.pop %v325
  %v330 = vrcp.pop %v328
  %v331 = vmul.f32 %v320, %v329
  %v332 = vmul.f32 %v322, %v330
  %333 = vrot.lane.b32.xlu0 %v159, 56
  %v334 = vpop.permute.xlu0 %333
  %335 = vrot.lane.b32.xlu0 %v162, 56
  %v336 = vpop.permute.xlu0 %335
  %v340 = vsel %vm210, %v331, 0
  %v343 = vsel %vm210, %v332, 0
  %345 = vmatpush.msra.mxu0 0.0
  %346 = vmatpush.msra.mxu0 0.0
  %347 = vmatpush.msra.mxu0 0.0
  %348 = vmatpush.msra.mxu0 0.0
  %349 = vmatpush.msra.mxu0 0.0
  %350 = vmatpush.msra.mxu0 0.0
  %351 = vmatpush.msra.mxu0 0.0
  %352 = vmatpush.msra.mxu0 0.0
  %353 = vmatpush.msra.mxu0 0.0
  %354 = vmatpush.msra.mxu0 0.0
  %355 = vmatpush.msra.mxu0 0.0
  %356 = vmatpush.msra.mxu0 0.0
  %357 = vmatpush.msra.mxu0 0.0
  %358 = vmatpush.msra.mxu0 0.0
  %359 = vmatpush.msra.mxu0 %v336
  %360 = vmatpush.msra.mxu0 %v334
  %361 = vmatmul.f32.gmra.mxu0 %v340
  %v362 = vpop.f32.mrf.mxu0
  %v363 = vadd.f32 0.0, %v362
  %364 = vmatmul.f32.gmra.mxu0 %v343
  %v365 = vpop.f32.mrf.mxu0
  %v366 = vadd.f32 0.0, %v365
  %367 = vdwg.mxu0
  %v369 = vsel %vm174, %v363, 0
  %v372 = vsel %vm174, %v366, 0
  %374 = vmatpush.msra.mxu0 0.0
  %375 = vmatpush.msra.mxu0 0.0
  %376 = vmatpush.msra.mxu0 0.0
  %377 = vmatpush.msra.mxu0 0.0
  %378 = vmatpush.msra.mxu0 0.0
  %379 = vmatpush.msra.mxu0 0.0
  %380 = vmatpush.msra.mxu0 0.0
  %381 = vmatpush.msra.mxu0 0.0
  %382 = vmatpush.msra.mxu0 0.0
  %383 = vmatpush.msra.mxu0 0.0
  %384 = vmatpush.msra.mxu0 0.0
  %385 = vmatpush.msra.mxu0 0.0
  %386 = vmatpush.msra.mxu0 0.0
  %387 = vmatpush.msra.mxu0 0.0
  %388 = vmatpush.msra.mxu0 0.0
  %389 = vmatpush.msra.mxu0 %v165
  %390 = vmatmul.f32.gmra.mxu0 %v369
  %v391 = vpop.f32.mrf.mxu0
  %v392 = vadd.f32 0.0, %v391
  %393 = vmatmul.f32.gmra.mxu0 %v372
  %v394 = vpop.f32.mrf.mxu0
  %v395 = vadd.f32 0.0, %v394
  %396 = vdwg.mxu0
  %v398 = vsel %vm174, %v263, 0
  %v401 = vsel %vm174, %v266, 0
  %403 = vmatpush.msra.mxu0 0.0
  %404 = vmatpush.msra.mxu0 0.0
  %405 = vmatpush.msra.mxu0 0.0
  %406 = vmatpush.msra.mxu0 0.0
  %407 = vmatpush.msra.mxu0 0.0
  %408 = vmatpush.msra.mxu0 0.0
  %409 = vmatpush.msra.mxu0 0.0
  %410 = vmatpush.msra.mxu0 0.0
  %411 = vmatpush.msra.mxu0 0.0
  %412 = vmatpush.msra.mxu0 0.0
  %413 = vmatpush.msra.mxu0 0.0
  %414 = vmatpush.msra.mxu0 0.0
  %415 = vmatpush.msra.mxu0 0.0
  %416 = vmatpush.msra.mxu0 0.0
  %417 = vmatpush.msra.mxu0 0.0
  %418 = vmatpush.msra.mxu0 %v164
  %419 = vmatmul.f32.gmra.mxu0 %v398
  %v420 = vpop.f32.mrf.mxu0
  %v421 = vadd.f32 %v392, %v420
  %422 = vmatmul.f32.gmra.mxu0 %v401
  %v423 = vpop.f32.mrf.mxu0
  %v424 = vadd.f32 %v395, %v423
  %425 = vdwg.mxu0
  %426 = vrot.lane.b32.xlu0 %v159, 112
  %v427 = vpop.permute.xlu0 %426
  %428 = vrot.lane.b32.xlu0 %v162, 112
  %v429 = vpop.permute.xlu0 %428
  %430 = vrot.lane.b32.xlu0 %v159, 80
  %v431 = vpop.permute.xlu0 %430
  %432 = vrot.lane.b32.xlu0 %v162, 80
  %v433 = vpop.permute.xlu0 %432
  %v434 = vsel %vm174, %v427, 0
  %v436 = vsel %vm174, %v429, 0
  %v438 = vsel %vm174, %v431, 0
  %v440 = vsel %vm174, %v433, 0
  %442 = vmatpush.xpose.msra.mxu0 0.0
  %443 = vmatpush.xpose.msra.mxu0 0.0
  %444 = vmatpush.xpose.msra.mxu0 0.0
  %445 = vmatpush.xpose.msra.mxu0 0.0
  %446 = vmatpush.xpose.msra.mxu0 0.0
  %447 = vmatpush.xpose.msra.mxu0 0.0
  %448 = vmatpush.xpose.msra.mxu0 0.0
  %449 = vmatpush.xpose.msra.mxu0 0.0
  %450 = vmatpush.xpose.msra.mxu0 0.0
  %451 = vmatpush.xpose.msra.mxu0 0.0
  %452 = vmatpush.xpose.msra.mxu0 0.0
  %453 = vmatpush.xpose.msra.mxu0 0.0
  %454 = vmatpush.xpose.msra.mxu0 0.0
  %455 = vmatpush.xpose.msra.mxu0 0.0
  %456 = vmatpush.xpose.msra.mxu0 %v440
  %457 = vmatpush.xpose.msra.mxu0 %v438
  %458 = vmatmul.f32.gmra.mxu0 %v434
  %v459 = vpop.f32.mrf.mxu0
  %v460 = vadd.f32 0.0, %v459
  %461 = vmatmul.f32.gmra.mxu0 %v436
  %v462 = vpop.f32.mrf.mxu0
  %v463 = vadd.f32 0.0, %v462
  %464 = vdwg.mxu0
  %v465 = vmul.f32 %v460, 0.35355338
  %v466 = vmul.f32 %v463, 0.35355338
  %v467 = vadd.f32 %v465, %v61
  %v468 = vadd.f32 %v466, %v62
  %v469 = vsel %vm210, %v467, -inf
  %470 = vmax.xlane.f32.xlu0 %v469
  %v471 = vpop.xlane.xlu0 %470
  %v472 = vsel %vm210, %v468, -inf
  %473 = vmax.xlane.f32.xlu0 %v472
  %v474 = vpop.xlane.xlu0 %473
  %v475 = vsub.f32 %v467, %v471
  %v476 = vsub.f32 %v468, %v474
  %v477 = vmul.f32 %v475, 1.442695
  %v478 = vpow.pop %v477
  %v479 = vmul.f32 %v476, 1.442695
  %v480 = vpow.pop %v479
  %v481 = vsel %vm210, %v478, 0.0
  %482 = vadd.xlane.f32.xlu0 %v481
  %v483 = vpop.xlane.xlu0 %482
  %v484 = vsel %vm210, %v480, 0.0
  %485 = vadd.xlane.f32.xlu0 %v484
  %v486 = vpop.xlane.xlu0 %485
  %v487 = vrcp.pop %v483
  %v488 = vrcp.pop %v486
  %v489 = vmul.f32 %v478, %v487
  %v490 = vmul.f32 %v480, %v488
  %491 = vrot.lane.b32.xlu0 %v159, 48
  %v492 = vpop.permute.xlu0 %491
  %493 = vrot.lane.b32.xlu0 %v162, 48
  %v494 = vpop.permute.xlu0 %493
  %v498 = vsel %vm210, %v489, 0
  %v501 = vsel %vm210, %v490, 0
  %503 = vmatpush.msra.mxu0 0.0
  %504 = vmatpush.msra.mxu0 0.0
  %505 = vmatpush.msra.mxu0 0.0
  %506 = vmatpush.msra.mxu0 0.0
  %507 = vmatpush.msra.mxu0 0.0
  %508 = vmatpush.msra.mxu0 0.0
  %509 = vmatpush.msra.mxu0 0.0
  %510 = vmatpush.msra.mxu0 0.0
  %511 = vmatpush.msra.mxu0 0.0
  %512 = vmatpush.msra.mxu0 0.0
  %513 = vmatpush.msra.mxu0 0.0
  %514 = vmatpush.msra.mxu0 0.0
  %515 = vmatpush.msra.mxu0 0.0
  %516 = vmatpush.msra.mxu0 0.0
  %517 = vmatpush.msra.mxu0 %v494
  %518 = vmatpush.msra.mxu0 %v492
  %519 = vmatmul.f32.gmra.mxu0 %v498
  %v520 = vpop.f32.mrf.mxu0
  %v521 = vadd.f32 0.0, %v520
  %522 = vmatmul.f32.gmra.mxu0 %v501
  %v523 = vpop.f32.mrf.mxu0
  %v524 = vadd.f32 0.0, %v523
  %525 = vdwg.mxu0
  %v527 = vsel %vm174, %v521, 0
  %v530 = vsel %vm174, %v524, 0
  %532 = vmatpush.msra.mxu0 0.0
  %533 = vmatpush.msra.mxu0 0.0
  %534 = vmatpush.msra.mxu0 0.0
  %535 = vmatpush.msra.mxu0 0.0
  %536 = vmatpush.msra.mxu0 0.0
  %537 = vmatpush.msra.mxu0 0.0
  %538 = vmatpush.msra.mxu0 0.0
  %539 = vmatpush.msra.mxu0 0.0
  %540 = vmatpush.msra.mxu0 0.0
  %541 = vmatpush.msra.mxu0 0.0
  %542 = vmatpush.msra.mxu0 0.0
  %543 = vmatpush.msra.mxu0 0.0
  %544 = vmatpush.msra.mxu0 0.0
  %545 = vmatpush.msra.mxu0 0.0
  %546 = vmatpush.msra.mxu0 0.0
  %547 = vmatpush.msra.mxu0 %v166
  %548 = vmatmul.f32.gmra.mxu0 %v527
  %v549 = vpop.f32.mrf.mxu0
  %v550 = vadd.f32 0.0, %v549
  %551 = vmatmul.f32.gmra.mxu0 %v530
  %v552 = vpop.f32.mrf.mxu0
  %v553 = vadd.f32 0.0, %v552
  %554 = vdwg.mxu0
  %v555 = vadd.f32 %v421, %v550
  %v556 = vadd.f32 %v424, %v553
  %557 = vrot.lane.b32.xlu0 %v159, 104
  %v558 = vpop.permute.xlu0 %557
  %559 = vrot.lane.b32.xlu0 %v162, 104
  %v560 = vpop.permute.xlu0 %559
  %561 = vrot.lane.b32.xlu0 %v159, 72
  %v562 = vpop.permute.xlu0 %561
  %563 = vrot.lane.b32.xlu0 %v162, 72
  %v564 = vpop.permute.xlu0 %563
  %v565 = vsel %vm174, %v558, 0
  %v567 = vsel %vm174, %v560, 0
  %v569 = vsel %vm174, %v562, 0
  %v571 = vsel %vm174, %v564, 0
  %573 = vmatpush.xpose.msra.mxu0 0.0
  %574 = vmatpush.xpose.msra.mxu0 0.0
  %575 = vmatpush.xpose.msra.mxu0 0.0
  %576 = vmatpush.xpose.msra.mxu0 0.0
  %577 = vmatpush.xpose.msra.mxu0 0.0
  %578 = vmatpush.xpose.msra.mxu0 0.0
  %579 = vmatpush.xpose.msra.mxu0 0.0
  %580 = vmatpush.xpose.msra.mxu0 0.0
  %581 = vmatpush.xpose.msra.mxu0 0.0
  %582 = vmatpush.xpose.msra.mxu0 0.0
  %583 = vmatpush.xpose.msra.mxu0 0.0
  %584 = vmatpush.xpose.msra.mxu0 0.0
  %585 = vmatpush.xpose.msra.mxu0 0.0
  %586 = vmatpush.xpose.msra.mxu0 0.0
  %587 = vmatpush.xpose.msra.mxu0 %v571
  %588 = vmatpush.xpose.msra.mxu0 %v569
  %589 = vmatmul.f32.gmra.mxu0 %v565
  %v590 = vpop.f32.mrf.mxu0
  %v591 = vadd.f32 0.0, %v590
  %592 = vmatmul.f32.gmra.mxu0 %v567
  %v593 = vpop.f32.mrf.mxu0
  %v594 = vadd.f32 0.0, %v593
  %595 = vdwg.mxu0
  %v596 = vmul.f32 %v591, 0.35355338
  %v597 = vmul.f32 %v594, 0.35355338
  %v598 = vadd.f32 %v596, %v61
  %v599 = vadd.f32 %v597, %v62
  %v600 = vsel %vm210, %v598, -inf
  %601 = vmax.xlane.f32.xlu0 %v600
  %v602 = vpop.xlane.xlu0 %601
  %v603 = vsel %vm210, %v599, -inf
  %604 = vmax.xlane.f32.xlu0 %v603
  %v605 = vpop.xlane.xlu0 %604
  %v606 = vsub.f32 %v598, %v602
  %v607 = vsub.f32 %v599, %v605
  %v608 = vmul.f32 %v606, 1.442695
  %v609 = vpow.pop %v608
  %v610 = vmul.f32 %v607, 1.442695
  %v611 = vpow.pop %v610
  %v612 = vsel %vm210, %v609, 0.0
  %613 = vadd.xlane.f32.xlu0 %v612
  %v614 = vpop.xlane.xlu0 %613
  %v615 = vsel %vm210, %v611, 0.0
  %616 = vadd.xlane.f32.xlu0 %v615
  %v617 = vpop.xlane.xlu0 %616
  %v618 = vrcp.pop %v614
  %v619 = vrcp.pop %v617
  %v620 = vmul.f32 %v609, %v618
  %v621 = vmul.f32 %v611, %v619
  %622 = vrot.lane.b32.xlu0 %v159, 40
  %v623 = vpop.permute.xlu0 %622
  %624 = vrot.lane.b32.xlu0 %v162, 40
  %v625 = vpop.permute.xlu0 %624
  %v629 = vsel %vm210, %v620, 0
  %v632 = vsel %vm210, %v621, 0
  %634 = vmatpush.msra.mxu0 0.0
  %635 = vmatpush.msra.mxu0 0.0
  %636 = vmatpush.msra.mxu0 0.0
  %637 = vmatpush.msra.mxu0 0.0
  %638 = vmatpush.msra.mxu0 0.0
  %639 = vmatpush.msra.mxu0 0.0
  %640 = vmatpush.msra.mxu0 0.0
  %641 = vmatpush.msra.mxu0 0.0
  %642 = vmatpush.msra.mxu0 0.0
  %643 = vmatpush.msra.mxu0 0.0
  %644 = vmatpush.msra.mxu0 0.0
  %645 = vmatpush.msra.mxu0 0.0
  %646 = vmatpush.msra.mxu0 0.0
  %647 = vmatpush.msra.mxu0 0.0
  %648 = vmatpush.msra.mxu0 %v625
  %649 = vmatpush.msra.mxu0 %v623
  %650 = vmatmul.f32.gmra.mxu0 %v629
  %v651 = vpop.f32.mrf.mxu0
  %v652 = vadd.f32 0.0, %v651
  %653 = vmatmul.f32.gmra.mxu0 %v632
  %v654 = vpop.f32.mrf.mxu0
  %v655 = vadd.f32 0.0, %v654
  %656 = vdwg.mxu0
  %v658 = vsel %vm174, %v652, 0
  %v661 = vsel %vm174, %v655, 0
  %663 = vmatpush.msra.mxu0 0.0
  %664 = vmatpush.msra.mxu0 0.0
  %665 = vmatpush.msra.mxu0 0.0
  %666 = vmatpush.msra.mxu0 0.0
  %667 = vmatpush.msra.mxu0 0.0
  %668 = vmatpush.msra.mxu0 0.0
  %669 = vmatpush.msra.mxu0 0.0
  %670 = vmatpush.msra.mxu0 0.0
  %671 = vmatpush.msra.mxu0 0.0
  %672 = vmatpush.msra.mxu0 0.0
  %673 = vmatpush.msra.mxu0 0.0
  %674 = vmatpush.msra.mxu0 0.0
  %675 = vmatpush.msra.mxu0 0.0
  %676 = vmatpush.msra.mxu0 0.0
  %677 = vmatpush.msra.mxu0 0.0
  %678 = vmatpush.msra.mxu0 %v167
  %679 = vmatmul.f32.gmra.mxu0 %v658
  %v680 = vpop.f32.mrf.mxu0
  %v681 = vadd.f32 0.0, %v680
  %682 = vmatmul.f32.gmra.mxu0 %v661
  %v683 = vpop.f32.mrf.mxu0
  %v684 = vadd.f32 0.0, %v683
  %685 = vdwg.mxu0
  %v686 = vadd.f32 %v555, %v681
  %v687 = vadd.f32 %v556, %v684
  %v688 = vld [vmem:[%s7] sm:$0x1]
  %v690 = vperm.slane %v688, 0
  %v692 = vadd.f32 %v686, %v690
  %v693 = vadd.f32 %v687, %v690
  %v694 = vadd.f32 %v692, %v125
  %v695 = vadd.f32 %v693, %v126
  %v696 = vld [vmem:[%s8] sm:$0x1]
  %v697 = vld [vmem:[%s9] sm:$0x1]
  %v698 = vsel %vm65, %v694, 0.0
  %699 = vadd.xlane.f32.xlu0 %v698
  %v700 = vpop.xlane.xlu0 %699
  %v701 = vsel %vm65, %v695, 0.0
  %702 = vadd.xlane.f32.xlu0 %v701
  %v703 = vpop.xlane.xlu0 %702
  %v704 = vmul.f32 %v700, %v78
  %v705 = vmul.f32 %v703, %v78
  %v706 = vsub.f32 %v694, %v704
  %v707 = vsub.f32 %v695, %v705
  %v708 = vmul.f32 %v706, %v706
  %v709 = vmul.f32 %v707, %v707
  %v710 = vsel %vm65, %v708, 0.0
  %711 = vadd.xlane.f32.xlu0 %v710
  %v712 = vpop.xlane.xlu0 %711
  %v713 = vsel %vm65, %v709, 0.0
  %714 = vadd.xlane.f32.xlu0 %v713
  %v715 = vpop.xlane.xlu0 %714
  %v716 = vmul.f32 %v712, %v78
  %v717 = vmul.f32 %v715, %v78
  %v718 = vadd.f32 %v716, 1e-12
  %v719 = vadd.f32 %v717, 1e-12
  %v720 = vrsqrt.pop %v718
  %v721 = vmul.f32 %v720, %v718
  %v722 = vmul.f32 %v721, %v720
  %v723 = vmul.f32 0.5, %v722
  %v724 = vsub.f32 1.5, %v723
  %v725 = vmul.f32 %v720, %v724
  %vm726 = vweird.f32 %v718
  %vm727 = vweird.f32 %v720
  %vm728 = vmor %vm726, %vm727
  %v729 = vsel %vm728, %v720, %v725
  %v730 = vrsqrt.pop %v719
  %v731 = vmul.f32 %v730, %v719
  %v732 = vmul.f32 %v731, %v730
  %v733 = vmul.f32 0.5, %v732
  %v734 = vsub.f32 1.5, %v733
  %v735 = vmul.f32 %v730, %v734
  %vm736 = vweird.f32 %v719
  %vm737 = vweird.f32 %v730
  %vm738 = vmor %vm736, %vm737
  %v739 = vsel %vm738, %v730, %v735
  %v740 = vmul.f32 %v706, %v729
  %v741 = vmul.f32 %v707, %v739
  %v743 = vperm.slane %v696, 0
  %v745 = vmul.f32 %v740, %v743
  %v746 = vmul.f32 %v741, %v743
  %v748 = vperm.slane %v697, 0
  %v750 = vadd.f32 %v745, %v748
  %v751 = vadd.f32 %v746, %v748
  %v752 = vld [vmem:[%s10] sm:$0xff]
  %v753 = vld [vmem:[%s10 + $0x8] sm:$0xff]
  %v754 = vld [vmem:[%s10 + $0x10] sm:$0xff]
  %v755 = vld [vmem:[%s10 + $0x18] sm:$0xff]
  %v756 = vld [vmem:[%s11] sm:$0x1]
  %v758 = vperm.slane %v756, 0
  %v761 = vsel %vm65, %v750, 0
  %v764 = vsel %vm65, %v751, 0
  %766 = vmatpush.msra.mxu0 0.0
  %767 = vmatpush.msra.mxu0 0.0
  %768 = vmatpush.msra.mxu0 0.0
  %769 = vmatpush.msra.mxu0 0.0
  %770 = vmatpush.msra.mxu0 0.0
  %771 = vmatpush.msra.mxu0 0.0
  %772 = vmatpush.msra.mxu0 0.0
  %773 = vmatpush.msra.mxu0 0.0
  %774 = vmatpush.msra.mxu0 0.0
  %775 = vmatpush.msra.mxu0 0.0
  %776 = vmatpush.msra.mxu0 0.0
  %777 = vmatpush.msra.mxu0 0.0
  %778 = vmatpush.msra.mxu0 %v755
  %779 = vmatpush.msra.mxu0 %v754
  %780 = vmatpush.msra.mxu0 %v753
  %781 = vmatpush.msra.mxu0 %v752
  %782 = vmatmul.f32.gmra.mxu0 %v761
  %v783 = vpop.f32.mrf.mxu0
  %v784 = vadd.f32 %v758, %v783
  %785 = vmatmul.f32.gmra.mxu0 %v764
  %v786 = vpop.f32.mrf.mxu0
  %v787 = vadd.f32 %v758, %v786
  %788 = vdwg.mxu0
  %v789 = vmul.f32 %v784, 0.5
  %v790 = vmul.f32 %v787, 0.5
  %v791 = vmul.f32 %v784, 0.70710677
  %v792 = vmul.f32 %v787, 0.70710677
  %v793 = vmul.f32 %v791, %v791
  %v794 = vmin.f32 16.0, %v793
  %v795 = vmul.f32 %v794, 2.1237322e-06
  %v796 = vadd.f32 %v795, 0.00028619796
  %v797 = vmul.f32 %v794, %v796
  %v798 = vadd.f32 %v797, 0.0036580483
  %v799 = vmul.f32 %v794, %v798
  %v800 = vadd.f32 %v799, 0.05243302
  %v801 = vmul.f32 %v794, %v800
  %v802 = vadd.f32 %v801, 0.18741608
  %v803 = vmul.f32 %v794, %v802
  %v804 = vadd.f32 %v803, 1.1283791
  %v805 = vmul.f32 %v791, %v804
  %v806 = vmul.f32 %v794, 3.8918573e-05
  %v807 = vadd.f32 %v806, 0.001143296
  %v808 = vmul.f32 %v794, %v807
  %v809 = vadd.f32 %v808, 0.014752088
  %v810 = vmul.f32 %v794, %v809
  %v811 = vadd.f32 %v810, 0.112945676
  %v812 = vmul.f32 %v794, %v811
  %v813 = vadd.f32 %v812, 0.4994258
  %v814 = vmul.f32 %v794, %v813
  %v815 = vadd.f32 %v814, 1.0
  %v816 = vrcp.pop %v815
  %v817 = vmul.f32 %v815, %v816
  %v818 = vsub.f32 1.0, %v817
  %v819 = vmul.f32 %v816, %v818
  %v820 = vadd.f32 %v816, %v819
  %vm821 = vweird.f32 %v815
  %vm822 = vweird.f32 %v816
  %vm823 = vmor %vm821, %vm822
  %v824 = vsel %vm823, %v816, %v820
  %v825 = vand.u32 2147483647, %v815
  %vm826 = vcmp.eq.f32.partialorder %v825, 8.507059e+37
  %v827 = vand.u32 %v815, 2147483648
  %v828 = vor.u32 1.1754944e-38, %v827
  %v829 = vsel %vm826, %v828, %v824
  %v830 = vmul.f32 %v805, %v829
  %v831 = vmin.f32 %v830, 1.0
  %v832 = vmax.f32 %v831, -1.0
  %v833 = vmul.f32 %v792, %v792
  %v834 = vmin.f32 16.0, %v833
  %v835 = vmul.f32 %v834, 2.1237322e-06
  %v836 = vadd.f32 %v835, 0.00028619796
  %v837 = vmul.f32 %v834, %v836
  %v838 = vadd.f32 %v837, 0.0036580483
  %v839 = vmul.f32 %v834, %v838
  %v840 = vadd.f32 %v839, 0.05243302
  %v841 = vmul.f32 %v834, %v840
  %v842 = vadd.f32 %v841, 0.18741608
  %v843 = vmul.f32 %v834, %v842
  %v844 = vadd.f32 %v843, 1.1283791
  %v845 = vmul.f32 %v792, %v844
  %v846 = vmul.f32 %v834, 3.8918573e-05
  %v847 = vadd.f32 %v846, 0.001143296
  %v848 = vmul.f32 %v834, %v847
  %v849 = vadd.f32 %v848, 0.014752088
  %v850 = vmul.f32 %v834, %v849
  %v851 = vadd.f32 %v850, 0.112945676
  %v852 = vmul.f32 %v834, %v851
  %v853 = vadd.f32 %v852, 0.4994258
  %v854 = vmul.f32 %v834, %v853
  %v855 = vadd.f32 %v854, 1.0
  %v856 = vrcp.pop %v855
  %v857 = vmul.f32 %v855, %v856
  %v858 = vsub.f32 1.0, %v857
  %v859 = vmul.f32 %v856, %v858
  %v860 = vadd.f32 %v856, %v859
  %vm861 = vweird.f32 %v855
  %vm862 = vweird.f32 %v856
  %vm863 = vmor %vm861, %vm862
  %v864 = vsel %vm863, %v856, %v860
  %v865 = vand.u32 2147483647, %v855
  %vm866 = vcmp.eq.f32.partialorder %v865, 8.507059e+37
  %v867 = vand.u32 %v855, 2147483648
  %v868 = vor.u32 1.1754944e-38, %v867
  %v869 = vsel %vm866, %v868, %v864
  %v870 = vmul.f32 %v845, %v869
  %v871 = vmin.f32 %v870, 1.0
  %v872 = vmax.f32 %v871, -1.0
  %v873 = vadd.f32 %v832, 1.0
  %v874 = vadd.f32 %v872, 1.0
  %v875 = vmul.f32 %v789, %v873
  %v876 = vmul.f32 %v790, %v874
  %v877 = vld [vmem:[%s12] sm:$0xff]
  %v878 = vld [vmem:[%s12 + $0x8] sm:$0xff]
  %v879 = vld [vmem:[%s12 + $0x10] sm:$0xff]
  %v880 = vld [vmem:[%s12 + $0x18] sm:$0xff]
  %v881 = vld [vmem:[%s12 + $0x20] sm:$0xff]
  %v882 = vld [vmem:[%s12 + $0x28] sm:$0xff]
  %v883 = vld [vmem:[%s12 + $0x30] sm:$0xff]
  %v884 = vld [vmem:[%s12 + $0x38] sm:$0xff]
  %v885 = vld [vmem:[%s13] sm:$0x1]
  %v887 = vperm.slane %v885, 0
  %vm889 = vcmask 523264
  %v891 = vsel %vm889, %v875, 0
  %v894 = vsel %vm889, %v876, 0
  %896 = vmatpush.msra.mxu0 0.0
  %897 = vmatpush.msra.mxu0 0.0
  %898 = vmatpush.msra.mxu0 0.0
  %899 = vmatpush.msra.mxu0 0.0
  %900 = vmatpush.msra.mxu0 0.0
  %901 = vmatpush.msra.mxu0 0.0
  %902 = vmatpush.msra.mxu0 0.0
  %903 = vmatpush.msra.mxu0 0.0
  %904 = vmatpush.msra.mxu0 %v884
  %905 = vmatpush.msra.mxu0 %v883
  %906 = vmatpush.msra.mxu0 %v882
  %907 = vmatpush.msra.mxu0 %v881
  %908 = vmatpush.msra.mxu0 %v880
  %909 = vmatpush.msra.mxu0 %v879
  %910 = vmatpush.msra.mxu0 %v878
  %911 = vmatpush.msra.mxu0 %v877
  %912 = vmatmul.f32.gmra.mxu0 %v891
  %v913 = vpop.f32.mrf.mxu0
  %v914 = vadd.f32 %v887, %v913
  %915 = vmatmul.f32.gmra.mxu0 %v894
  %v916 = vpop.f32.mrf.mxu0
  %v917 = vadd.f32 %v887, %v916
  %918 = vdwg.mxu0
  %v919 = vadd.f32 %v914, %v750
  %v920 = vadd.f32 %v917, %v751
  %v921 = vld [vmem:[%s14] sm:$0x1]
  %v922 = vld [vmem:[%s15] sm:$0x1]
  %v923 = vsel %vm65, %v919, 0.0
  %924 = vadd.xlane.f32.xlu0 %v923
  %v925 = vpop.xlane.xlu0 %924
  %v926 = vsel %vm65, %v920, 0.0
  %927 = vadd.xlane.f32.xlu0 %v926
  %v928 = vpop.xlane.xlu0 %927
  %v929 = vmul.f32 %v925, %v78
  %v930 = vmul.f32 %v928, %v78
  %v931 = vsub.f32 %v919, %v929
  %v932 = vsub.f32 %v920, %v930
  %v933 = vmul.f32 %v931, %v931
  %v934 = vmul.f32 %v932, %v932
  %v935 = vsel %vm65, %v933, 0.0
  %936 = vadd.xlane.f32.xlu0 %v935
  %v937 = vpop.xlane.xlu0 %936
  %v938 = vsel %vm65, %v934, 0.0
  %939 = vadd.xlane.f32.xlu0 %v938
  %v940 = vpop.xlane.xlu0 %939
  %v941 = vmul.f32 %v937, %v78
  %v942 = vmul.f32 %v940, %v78
  %v943 = vadd.f32 %v941, 1e-12
  %v944 = vadd.f32 %v942, 1e-12
  %v945 = vrsqrt.pop %v943
  %v946 = vmul.f32 %v945, %v943
  %v947 = vmul.f32 %v946, %v945
  %v948 = vmul.f32 0.5, %v947
  %v949 = vsub.f32 1.5, %v948
  %v950 = vmul.f32 %v945, %v949
  %vm951 = vweird.f32 %v943
  %vm952 = vweird.f32 %v945
  %vm953 = vmor %vm951, %vm952
  %v954 = vsel %vm953, %v945, %v950
  %v955 = vrsqrt.pop %v944
  %v956 = vmul.f32 %v955, %v944
  %v957 = vmul.f32 %v956, %v955
  %v958 = vmul.f32 0.5, %v957
  %v959 = vsub.f32 1.5, %v958
  %v960 = vmul.f32 %v955, %v959
  %vm961 = vweird.f32 %v944
  %vm962 = vweird.f32 %v955
  %vm963 = vmor %vm961, %vm962
  %v964 = vsel %vm963, %v955, %v960
  %v965 = vmul.f32 %v931, %v954
  %v966 = vmul.f32 %v932, %v964
  %v968 = vperm.slane %v921, 0
  %v970 = vmul.f32 %v965, %v968
  %v971 = vmul.f32 %v966, %v968
  %v973 = vperm.slane %v922, 0
  %v975 = vadd.f32 %v970, %v973
  %v976 = vadd.f32 %v971, %v973
  %s977 = scalar_lea.vmem %s4, 32
  %v978 = vld [vmem:[%s977] sm:$0xff]
  %v979 = vld [vmem:[%s977 + $0x8] sm:$0xff]
  %v980 = vld [vmem:[%s977 + $0x10] sm:$0xff]
  %v981 = vld [vmem:[%s977 + $0x18] sm:$0xff]
  %s982 = scalar_lea.vmem %s5, 1
  %v983 = vld [vmem:[%s982] sm:$0x1]
  %v985 = vperm.slane %v983, 0
  %v988 = vsel %vm65, %v975, 0
  %v991 = vsel %vm65, %v976, 0
  %993 = vmatpush.msra.mxu0 0.0
  %994 = vmatpush.msra.mxu0 0.0
  %995 = vmatpush.msra.mxu0 0.0
  %996 = vmatpush.msra.mxu0 0.0
  %997 = vmatpush.msra.mxu0 0.0
  %998 = vmatpush.msra.mxu0 0.0
  %999 = vmatpush.msra.mxu0 0.0
  %1000 = vmatpush.msra.mxu0 0.0
  %1001 = vmatpush.msra.mxu0 0.0
  %1002 = vmatpush.msra.mxu0 0.0
  %1003 = vmatpush.msra.mxu0 0.0
  %1004 = vmatpush.msra.mxu0 0.0
  %1005 = vmatpush.msra.mxu0 %v981
  %1006 = vmatpush.msra.mxu0 %v980
  %1007 = vmatpush.msra.mxu0 %v979
  %1008 = vmatpush.msra.mxu0 %v978
  %1009 = vmatmul.f32.gmra.mxu0 %v988
  %v1010 = vpop.f32.mrf.mxu0
  %v1011 = vadd.f32 %v985, %v1010
  %1012 = vmatmul.f32.gmra.mxu0 %v991
  %v1013 = vpop.f32.mrf.mxu0
  %v1014 = vadd.f32 %v985, %v1013
  %1015 = vdwg.mxu0
  %s1016 = scalar_lea.vmem %s6, 32
  %v1017 = vld [vmem:[%s1016] sm:$0xff]
  %v1018 = vld [vmem:[%s1016 + $0x8] sm:$0xff]
  %v1019 = vld [vmem:[%s1016 + $0x10] sm:$0xff]
  %v1020 = vld [vmem:[%s1016 + $0x18] sm:$0xff]
  %1023 = vrot.lane.b32.xlu0 %v1011, 96
  %v1024 = vpop.permute.xlu0 %1023
  %1025 = vrot.lane.b32.xlu0 %v1014, 96
  %v1026 = vpop.permute.xlu0 %1025
  %v1027 = vsel %vm174, %v1011, 0
  %v1029 = vsel %vm174, %v1014, 0
  %v1031 = vsel %vm174, %v1024, 0
  %v1033 = vsel %vm174, %v1026, 0
  %1035 = vmatpush.xpose.msra.mxu0 0.0
  %1036 = vmatpush.xpose.msra.mxu0 0.0
  %1037 = vmatpush.xpose.msra.mxu0 0.0
  %1038 = vmatpush.xpose.msra.mxu0 0.0
  %1039 = vmatpush.xpose.msra.mxu0 0.0
  %1040 = vmatpush.xpose.msra.mxu0 0.0
  %1041 = vmatpush.xpose.msra.mxu0 0.0
  %1042 = vmatpush.xpose.msra.mxu0 0.0
  %1043 = vmatpush.xpose.msra.mxu0 0.0
  %1044 = vmatpush.xpose.msra.mxu0 0.0
  %1045 = vmatpush.xpose.msra.mxu0 0.0
  %1046 = vmatpush.xpose.msra.mxu0 0.0
  %1047 = vmatpush.xpose.msra.mxu0 0.0
  %1048 = vmatpush.xpose.msra.mxu0 0.0
  %1049 = vmatpush.xpose.msra.mxu0 %v1033
  %1050 = vmatpush.xpose.msra.mxu0 %v1031
  %1051 = vmatmul.f32.gmra.mxu0 %v1027
  %v1052 = vpop.f32.mrf.mxu0
  %v1053 = vadd.f32 0.0, %v1052
  %1054 = vmatmul.f32.gmra.mxu0 %v1029
  %v1055 = vpop.f32.mrf.mxu0
  %v1056 = vadd.f32 0.0, %v1055
  %1057 = vdwg.mxu0
  %v1058 = vmul.f32 %v1053, 0.35355338
  %v1059 = vmul.f32 %v1056, 0.35355338
  %v1060 = vadd.f32 %v1058, %v61
  %v1061 = vadd.f32 %v1059, %v62
  %v1062 = vsel %vm210, %v1060, -inf
  %1063 = vmax.xlane.f32.xlu0 %v1062
  %v1064 = vpop.xlane.xlu0 %1063
  %v1065 = vsel %vm210, %v1061, -inf
  %1066 = vmax.xlane.f32.xlu0 %v1065
  %v1067 = vpop.xlane.xlu0 %1066
  %v1068 = vsub.f32 %v1060, %v1064
  %v1069 = vsub.f32 %v1061, %v1067
  %v1070 = vmul.f32 %v1068, 1.442695
  %v1071 = vpow.pop %v1070
  %v1072 = vmul.f32 %v1069, 1.442695
  %v1073 = vpow.pop %v1072
  %v1074 = vsel %vm210, %v1071, 0.0
  %1075 = vadd.xlane.f32.xlu0 %v1074
  %v1076 = vpop.xlane.xlu0 %1075
  %v1077 = vsel %vm210, %v1073, 0.0
  %1078 = vadd.xlane.f32.xlu0 %v1077
  %v1079 = vpop.xlane.xlu0 %1078
  %v1080 = vrcp.pop %v1076
  %v1081 = vrcp.pop %v1079
  %v1082 = vmul.f32 %v1071, %v1080
  %v1083 = vmul.f32 %v1073, %v1081
  %1084 = vrot.lane.b32.xlu0 %v1011, 64
  %v1085 = vpop.permute.xlu0 %1084
  %1086 = vrot.lane.b32.xlu0 %v1014, 64
  %v1087 = vpop.permute.xlu0 %1086
  %v1091 = vsel %vm210, %v1082, 0
  %v1094 = vsel %vm210, %v1083, 0
  %1096 = vmatpush.msra.mxu0 0.0
  %1097 = vmatpush.msra.mxu0 0.0
  %1098 = vmatpush.msra.mxu0 0.0
  %1099 = vmatpush.msra.mxu0 0.0
  %1100 = vmatpush.msra.mxu0 0.0
  %1101 = vmatpush.msra.mxu0 0.0
  %1102 = vmatpush.msra.mxu0 0.0
  %1103 = vmatpush.msra.mxu0 0.0
  %1104 = vmatpush.msra.mxu0 0.0
  %1105 = vmatpush.msra.mxu0 0.0
  %1106 = vmatpush.msra.mxu0 0.0
  %1107 = vmatpush.msra.mxu0 0.0
  %1108 = vmatpush.msra.mxu0 0.0
  %1109 = vmatpush.msra.mxu0 0.0
  %1110 = vmatpush.msra.mxu0 %v1087
  %1111 = vmatpush.msra.mxu0 %v1085
  %1112 = vmatmul.f32.gmra.mxu0 %v1091
  %v1113 = vpop.f32.mrf.mxu0
  %v1114 = vadd.f32 0.0, %v1113
  %1115 = vmatmul.f32.gmra.mxu0 %v1094
  %v1116 = vpop.f32.mrf.mxu0
  %v1117 = vadd.f32 0.0, %v1116
  %1118 = vdwg.mxu0
  %1119 = vrot.lane.b32.xlu0 %v1011, 120
  %v1120 = vpop.permute.xlu0 %1119
  %1121 = vrot.lane.b32.xlu0 %v1014, 120
  %v1122 = vpop.permute.xlu0 %1121
  %1123 = vrot.lane.b32.xlu0 %v1011, 88
  %v1124 = vpop.permute.xlu0 %1123
  %1125 = vrot.lane.b32.xlu0 %v1014, 88
  %v1126 = vpop.permute.xlu0 %1125
  %v1127 = vsel %vm174, %v1120, 0
  %v1129 = vsel %vm174, %v1122, 0
  %v1131 = vsel %vm174, %v1124, 0
  %v1133 = vsel %vm174, %v1126, 0
  %1135 = vmatpush.xpose.msra.mxu0 0.0
  %1136 = vmatpush.xpose.msra.mxu0 0.0
  %1137 = vmatpush.xpose.msra.mxu0 0.0
  %1138 = vmatpush.xpose.msra.mxu0 0.0
  %1139 = vmatpush.xpose.msra.mxu0 0.0
  %1140 = vmatpush.xpose.msra.mxu0 0.0
  %1141 = vmatpush.xpose.msra.mxu0 0.0
  %1142 = vmatpush.xpose.msra.mxu0 0.0
  %1143 = vmatpush.xpose.msra.mxu0 0.0
  %1144 = vmatpush.xpose.msra.mxu0 0.0
  %1145 = vmatpush.xpose.msra.mxu0 0.0
  %1146 = vmatpush.xpose.msra.mxu0 0.0
  %1147 = vmatpush.xpose.msra.mxu0 0.0
  %1148 = vmatpush.xpose.msra.mxu0 0.0
  %1149 = vmatpush.xpose.msra.mxu0 %v1133
  %1150 = vmatpush.xpose.msra.mxu0 %v1131
  %1151 = vmatmul.f32.gmra.mxu0 %v1127
  %v1152 = vpop.f32.mrf.mxu0
  %v1153 = vadd.f32 0.0, %v1152
  %1154 = vmatmul.f32.gmra.mxu0 %v1129
  %v1155 = vpop.f32.mrf.mxu0
  %v1156 = vadd.f32 0.0, %v1155
  %1157 = vdwg.mxu0
  %v1158 = vmul.f32 %v1153, 0.35355338
  %v1159 = vmul.f32 %v1156, 0.35355338
  %v1160 = vadd.f32 %v1158, %v61
  %v1161 = vadd.f32 %v1159, %v62
  %v1162 = vsel %vm210, %v1160, -inf
  %1163 = vmax.xlane.f32.xlu0 %v1162
  %v1164 = vpop.xlane.xlu0 %1163
  %v1165 = vsel %vm210, %v1161, -inf
  %1166 = vmax.xlane.f32.xlu0 %v1165
  %v1167 = vpop.xlane.xlu0 %1166
  %v1168 = vsub.f32 %v1160, %v1164
  %v1169 = vsub.f32 %v1161, %v1167
  %v1170 = vmul.f32 %v1168, 1.442695
  %v1171 = vpow.pop %v1170
  %v1172 = vmul.f32 %v1169, 1.442695
  %v1173 = vpow.pop %v1172
  %v1174 = vsel %vm210, %v1171, 0.0
  %1175 = vadd.xlane.f32.xlu0 %v1174
  %v1176 = vpop.xlane.xlu0 %1175
  %v1177 = vsel %vm210, %v1173, 0.0
  %1178 = vadd.xlane.f32.xlu0 %v1177
  %v1179 = vpop.xlane.xlu0 %1178
  %v1180 = vrcp.pop %v1176
  %v1181 = vrcp.pop %v1179
  %v1182 = vmul.f32 %v1171, %v1180
  %v1183 = vmul.f32 %v1173, %v1181
  %1184 = vrot.lane.b32.xlu0 %v1011, 56
  %v1185 = vpop.permute.xlu0 %1184
  %1186 = vrot.lane.b32.xlu0 %v1014, 56
  %v1187 = vpop.permute.xlu0 %1186
  %v1191 = vsel %vm210, %v1182, 0
  %v1194 = vsel %vm210, %v1183, 0
  %1196 = vmatpush.msra.mxu0 0.0
  %1197 = vmatpush.msra.mxu0 0.0
  %1198 = vmatpush.msra.mxu0 0.0
  %1199 = vmatpush.msra.mxu0 0.0
  %1200 = vmatpush.msra.mxu0 0.0
  %1201 = vmatpush.msra.mxu0 0.0
  %1202 = vmatpush.msra.mxu0 0.0
  %1203 = vmatpush.msra.mxu0 0.0
  %1204 = vmatpush.msra.mxu0 0.0
  %1205 = vmatpush.msra.mxu0 0.0
  %1206 = vmatpush.msra.mxu0 0.0
  %1207 = vmatpush.msra.mxu0 0.0
  %1208 = vmatpush.msra.mxu0 0.0
  %1209 = vmatpush.msra.mxu0 0.0
  %1210 = vmatpush.msra.mxu0 %v1187
  %1211 = vmatpush.msra.mxu0 %v1185
  %1212 = vmatmul.f32.gmra.mxu0 %v1191
  %v1213 = vpop.f32.mrf.mxu0
  %v1214 = vadd.f32 0.0, %v1213
  %1215 = vmatmul.f32.gmra.mxu0 %v1194
  %v1216 = vpop.f32.mrf.mxu0
  %v1217 = vadd.f32 0.0, %v1216
  %1218 = vdwg.mxu0
  %v1220 = vsel %vm174, %v1214, 0
  %v1223 = vsel %vm174, %v1217, 0
  %1225 = vmatpush.msra.mxu0 0.0
  %1226 = vmatpush.msra.mxu0 0.0
  %1227 = vmatpush.msra.mxu0 0.0
  %1228 = vmatpush.msra.mxu0 0.0
  %1229 = vmatpush.msra.mxu0 0.0
  %1230 = vmatpush.msra.mxu0 0.0
  %1231 = vmatpush.msra.mxu0 0.0
  %1232 = vmatpush.msra.mxu0 0.0
  %1233 = vmatpush.msra.mxu0 0.0
  %1234 = vmatpush.msra.mxu0 0.0
  %1235 = vmatpush.msra.mxu0 0.0
  %1236 = vmatpush.msra.mxu0 0.0
  %1237 = vmatpush.msra.mxu0 0.0
  %1238 = vmatpush.msra.mxu0 0.0
  %1239 = vmatpush.msra.mxu0 0.0
  %1240 = vmatpush.msra.mxu0 %v1018
  %1241 = vmatmul.f32.gmra.mxu0 %v1220
  %v1242 = vpop.f32.mrf.mxu0
  %v1243 = vadd.f32 0.0, %v1242
  %1244 = vmatmul.f32.gmra.mxu0 %v1223
  %v1245 = vpop.f32.mrf.mxu0
  %v1246 = vadd.f32 0.0, %v1245
  %1247 = vdwg.mxu0
  %v1249 = vsel %vm174, %v1114, 0
  %v1252 = vsel %vm174, %v1117, 0
  %1254 = vmatpush.msra.mxu0 0.0
  %1255 = vmatpush.msra.mxu0 0.0
  %1256 = vmatpush.msra.mxu0 0.0
  %1257 = vmatpush.msra.mxu0 0.0
  %1258 = vmatpush.msra.mxu0 0.0
  %1259 = vmatpush.msra.mxu0 0.0
  %1260 = vmatpush.msra.mxu0 0.0
  %1261 = vmatpush.msra.mxu0 0.0
  %1262 = vmatpush.msra.mxu0 0.0
  %1263 = vmatpush.msra.mxu0 0.0
  %1264 = vmatpush.msra.mxu0 0.0
  %1265 = vmatpush.msra.mxu0 0.0
  %1266 = vmatpush.msra.mxu0 0.0
  %1267 = vmatpush.msra.mxu0 0.0
  %1268 = vmatpush.msra.mxu0 0.0
  %1269 = vmatpush.msra.mxu0 %v1017
  %1270 = vmatmul.f32.gmra.mxu0 %v1249
  %v1271 = vpop.f32.mrf.mxu0
  %v1272 = vadd.f32 %v1243, %v1271
  %1273 = vmatmul.f32.gmra.mxu0 %v1252
  %v1274 = vpop.f32.mrf.mxu0
  %v1275 = vadd.f32 %v1246, %v1274
  %1276 = vdwg.mxu0
  %1277 = vrot.lane.b32.xlu0 %v1011, 112
  %v1278 = vpop.permute.xlu0 %1277
  %1279 = vrot.lane.b32.xlu0 %v1014, 112
  %v1280 = vpop.permute.xlu0 %1279
  %1281 = vrot.lane.b32.xlu0 %v1011, 80
  %v1282 = vpop.permute.xlu0 %1281
  %1283 = vrot.lane.b32.xlu0 %v1014, 80
  %v1284 = vpop.permute.xlu0 %1283
  %v1285 = vsel %vm174, %v1278, 0
  %v1287 = vsel %vm174, %v1280, 0
  %v1289 = vsel %vm174, %v1282, 0
  %v1291 = vsel %vm174, %v1284, 0
  %1293 = vmatpush.xpose.msra.mxu0 0.0
  %1294 = vmatpush.xpose.msra.mxu0 0.0
  %1295 = vmatpush.xpose.msra.mxu0 0.0
  %1296 = vmatpush.xpose.msra.mxu0 0.0
  %1297 = vmatpush.xpose.msra.mxu0 0.0
  %1298 = vmatpush.xpose.msra.mxu0 0.0
  %1299 = vmatpush.xpose.msra.mxu0 0.0
  %1300 = vmatpush.xpose.msra.mxu0 0.0
  %1301 = vmatpush.xpose.msra.mxu0 0.0
  %1302 = vmatpush.xpose.msra.mxu0 0.0
  %1303 = vmatpush.xpose.msra.mxu0 0.0
  %1304 = vmatpush.xpose.msra.mxu0 0.0
  %1305 = vmatpush.xpose.msra.mxu0 0.0
  %1306 = vmatpush.xpose.msra.mxu0 0.0
  %1307 = vmatpush.xpose.msra.mxu0 %v1291
  %1308 = vmatpush.xpose.msra.mxu0 %v1289
  %1309 = vmatmul.f32.gmra.mxu0 %v1285
  %v1310 = vpop.f32.mrf.mxu0
  %v1311 = vadd.f32 0.0, %v1310
  %1312 = vmatmul.f32.gmra.mxu0 %v1287
  %v1313 = vpop.f32.mrf.mxu0
  %v1314 = vadd.f32 0.0, %v1313
  %1315 = vdwg.mxu0
  %v1316 = vmul.f32 %v1311, 0.35355338
  %v1317 = vmul.f32 %v1314, 0.35355338
  %v1318 = vadd.f32 %v1316, %v61
  %v1319 = vadd.f32 %v1317, %v62
  %v1320 = vsel %vm210, %v1318, -inf
  %1321 = vmax.xlane.f32.xlu0 %v1320
  %v1322 = vpop.xlane.xlu0 %1321
  %v1323 = vsel %vm210, %v1319, -inf
  %1324 = vmax.xlane.f32.xlu0 %v1323
  %v1325 = vpop.xlane.xlu0 %1324
  %v1326 = vsub.f32 %v1318, %v1322
  %v1327 = vsub.f32 %v1319, %v1325
  %v1328 = vmul.f32 %v1326, 1.442695
  %v1329 = vpow.pop %v1328
  %v1330 = vmul.f32 %v1327, 1.442695
  %v1331 = vpow.pop %v1330
  %v1332 = vsel %vm210, %v1329, 0.0
  %1333 = vadd.xlane.f32.xlu0 %v1332
  %v1334 = vpop.xlane.xlu0 %1333
  %v1335 = vsel %vm210, %v1331, 0.0
  %1336 = vadd.xlane.f32.xlu0 %v1335
  %v1337 = vpop.xlane.xlu0 %1336
  %v1338 = vrcp.pop %v1334
  %v1339 = vrcp.pop %v1337
  %v1340 = vmul.f32 %v1329, %v1338
  %v1341 = vmul.f32 %v1331, %v1339
  %1342 = vrot.lane.b32.xlu0 %v1011, 48
  %v1343 = vpop.permute.xlu0 %1342
  %1344 = vrot.lane.b32.xlu0 %v1014, 48
  %v1345 = vpop.permute.xlu0 %1344
  %v1349 = vsel %vm210, %v1340, 0
  %v1352 = vsel %vm210, %v1341, 0
  %1354 = vmatpush.msra.mxu0 0.0
  %1355 = vmatpush.msra.mxu0 0.0
  %1356 = vmatpush.msra.mxu0 0.0
  %1357 = vmatpush.msra.mxu0 0.0
  %1358 = vmatpush.msra.mxu0 0.0
  %1359 = vmatpush.msra.mxu0 0.0
  %1360 = vmatpush.msra.mxu0 0.0
  %1361 = vmatpush.msra.mxu0 0.0
  %1362 = vmatpush.msra.mxu0 0.0
  %1363 = vmatpush.msra.mxu0 0.0
  %1364 = vmatpush.msra.mxu0 0.0
  %1365 = vmatpush.msra.mxu0 0.0
  %1366 = vmatpush.msra.mxu0 0.0
  %1367 = vmatpush.msra.mxu0 0.0
  %1368 = vmatpush.msra.mxu0 %v1345
  %1369 = vmatpush.msra.mxu0 %v1343
  %1370 = vmatmul.f32.gmra.mxu0 %v1349
  %v1371 = vpop.f32.mrf.mxu0
  %v1372 = vadd.f32 0.0, %v1371
  %1373 = vmatmul.f32.gmra.mxu0 %v1352
  %v1374 = vpop.f32.mrf.mxu0
  %v1375 = vadd.f32 0.0, %v1374
  %1376 = vdwg.mxu0
  %v1378 = vsel %vm174, %v1372, 0
  %v1381 = vsel %vm174, %v1375, 0
  %1383 = vmatpush.msra.mxu0 0.0
  %1384 = vmatpush.msra.mxu0 0.0
  %1385 = vmatpush.msra.mxu0 0.0
  %1386 = vmatpush.msra.mxu0 0.0
  %1387 = vmatpush.msra.mxu0 0.0
  %1388 = vmatpush.msra.mxu0 0.0
  %1389 = vmatpush.msra.mxu0 0.0
  %1390 = vmatpush.msra.mxu0 0.0
  %1391 = vmatpush.msra.mxu0 0.0
  %1392 = vmatpush.msra.mxu0 0.0
  %1393 = vmatpush.msra.mxu0 0.0
  %1394 = vmatpush.msra.mxu0 0.0
  %1395 = vmatpush.msra.mxu0 0.0
  %1396 = vmatpush.msra.mxu0 0.0
  %1397 = vmatpush.msra.mxu0 0.0
  %1398 = vmatpush.msra.mxu0 %v1019
  %1399 = vmatmul.f32.gmra.mxu0 %v1378
  %v1400 = vpop.f32.mrf.mxu0
  %v1401 = vadd.f32 0.0, %v1400
  %1402 = vmatmul.f32.gmra.mxu0 %v1381
  %v1403 = vpop.f32.mrf.mxu0
  %v1404 = vadd.f32 0.0, %v1403
  %1405 = vdwg.mxu0
  %v1406 = vadd.f32 %v1272, %v1401
  %v1407 = vadd.f32 %v1275, %v1404
  %1408 = vrot.lane.b32.xlu0 %v1011, 104
  %v1409 = vpop.permute.xlu0 %1408
  %1410 = vrot.lane.b32.xlu0 %v1014, 104
  %v1411 = vpop.permute.xlu0 %1410
  %1412 = vrot.lane.b32.xlu0 %v1011, 72
  %v1413 = vpop.permute.xlu0 %1412
  %1414 = vrot.lane.b32.xlu0 %v1014, 72
  %v1415 = vpop.permute.xlu0 %1414
  %v1416 = vsel %vm174, %v1409, 0
  %v1418 = vsel %vm174, %v1411, 0
  %v1420 = vsel %vm174, %v1413, 0
  %v1422 = vsel %vm174, %v1415, 0
  %1424 = vmatpush.xpose.msra.mxu0 0.0
  %1425 = vmatpush.xpose.msra.mxu0 0.0
  %1426 = vmatpush.xpose.msra.mxu0 0.0
  %1427 = vmatpush.xpose.msra.mxu0 0.0
  %1428 = vmatpush.xpose.msra.mxu0 0.0
  %1429 = vmatpush.xpose.msra.mxu0 0.0
  %1430 = vmatpush.xpose.msra.mxu0 0.0
  %1431 = vmatpush.xpose.msra.mxu0 0.0
  %1432 = vmatpush.xpose.msra.mxu0 0.0
  %1433 = vmatpush.xpose.msra.mxu0 0.0
  %1434 = vmatpush.xpose.msra.mxu0 0.0
  %1435 = vmatpush.xpose.msra.mxu0 0.0
  %1436 = vmatpush.xpose.msra.mxu0 0.0
  %1437 = vmatpush.xpose.msra.mxu0 0.0
  %1438 = vmatpush.xpose.msra.mxu0 %v1422
  %1439 = vmatpush.xpose.msra.mxu0 %v1420
  %1440 = vmatmul.f32.gmra.mxu0 %v1416
  %v1441 = vpop.f32.mrf.mxu0
  %v1442 = vadd.f32 0.0, %v1441
  %1443 = vmatmul.f32.gmra.mxu0 %v1418
  %v1444 = vpop.f32.mrf.mxu0
  %v1445 = vadd.f32 0.0, %v1444
  %1446 = vdwg.mxu0
  %v1447 = vmul.f32 %v1442, 0.35355338
  %v1448 = vmul.f32 %v1445, 0.35355338
  %v1449 = vadd.f32 %v1447, %v61
  %v1450 = vadd.f32 %v1448, %v62
  %v1451 = vsel %vm210, %v1449, -inf
  %1452 = vmax.xlane.f32.xlu0 %v1451
  %v1453 = vpop.xlane.xlu0 %1452
  %v1454 = vsel %vm210, %v1450, -inf
  %1455 = vmax.xlane.f32.xlu0 %v1454
  %v1456 = vpop.xlane.xlu0 %1455
  %v1457 = vsub.f32 %v1449, %v1453
  %v1458 = vsub.f32 %v1450, %v1456
  %v1459 = vmul.f32 %v1457, 1.442695
  %v1460 = vpow.pop %v1459
  %v1461 = vmul.f32 %v1458, 1.442695
  %v1462 = vpow.pop %v1461
  %v1463 = vsel %vm210, %v1460, 0.0
  %1464 = vadd.xlane.f32.xlu0 %v1463
  %v1465 = vpop.xlane.xlu0 %1464
  %v1466 = vsel %vm210, %v1462, 0.0
  %1467 = vadd.xlane.f32.xlu0 %v1466
  %v1468 = vpop.xlane.xlu0 %1467
  %v1469 = vrcp.pop %v1465
  %v1470 = vrcp.pop %v1468
  %v1471 = vmul.f32 %v1460, %v1469
  %v1472 = vmul.f32 %v1462, %v1470
  %1473 = vrot.lane.b32.xlu0 %v1011, 40
  %v1474 = vpop.permute.xlu0 %1473
  %1475 = vrot.lane.b32.xlu0 %v1014, 40
  %v1476 = vpop.permute.xlu0 %1475
  %v1480 = vsel %vm210, %v1471, 0
  %v1483 = vsel %vm210, %v1472, 0
  %1485 = vmatpush.msra.mxu0 0.0
  %1486 = vmatpush.msra.mxu0 0.0
  %1487 = vmatpush.msra.mxu0 0.0
  %1488 = vmatpush.msra.mxu0 0.0
  %1489 = vmatpush.msra.mxu0 0.0
  %1490 = vmatpush.msra.mxu0 0.0
  %1491 = vmatpush.msra.mxu0 0.0
  %1492 = vmatpush.msra.mxu0 0.0
  %1493 = vmatpush.msra.mxu0 0.0
  %1494 = vmatpush.msra.mxu0 0.0
  %1495 = vmatpush.msra.mxu0 0.0
  %1496 = vmatpush.msra.mxu0 0.0
  %1497 = vmatpush.msra.mxu0 0.0
  %1498 = vmatpush.msra.mxu0 0.0
  %1499 = vmatpush.msra.mxu0 %v1476
  %1500 = vmatpush.msra.mxu0 %v1474
  %1501 = vmatmul.f32.gmra.mxu0 %v1480
  %v1502 = vpop.f32.mrf.mxu0
  %v1503 = vadd.f32 0.0, %v1502
  %1504 = vmatmul.f32.gmra.mxu0 %v1483
  %v1505 = vpop.f32.mrf.mxu0
  %v1506 = vadd.f32 0.0, %v1505
  %1507 = vdwg.mxu0
  %v1509 = vsel %vm174, %v1503, 0
  %v1512 = vsel %vm174, %v1506, 0
  %1514 = vmatpush.msra.mxu0 0.0
  %1515 = vmatpush.msra.mxu0 0.0
  %1516 = vmatpush.msra.mxu0 0.0
  %1517 = vmatpush.msra.mxu0 0.0
  %1518 = vmatpush.msra.mxu0 0.0
  %1519 = vmatpush.msra.mxu0 0.0
  %1520 = vmatpush.msra.mxu0 0.0
  %1521 = vmatpush.msra.mxu0 0.0
  %1522 = vmatpush.msra.mxu0 0.0
  %1523 = vmatpush.msra.mxu0 0.0
  %1524 = vmatpush.msra.mxu0 0.0
  %1525 = vmatpush.msra.mxu0 0.0
  %1526 = vmatpush.msra.mxu0 0.0
  %1527 = vmatpush.msra.mxu0 0.0
  %1528 = vmatpush.msra.mxu0 0.0
  %1529 = vmatpush.msra.mxu0 %v1020
  %1530 = vmatmul.f32.gmra.mxu0 %v1509
  %v1531 = vpop.f32.mrf.mxu0
  %v1532 = vadd.f32 0.0, %v1531
  %1533 = vmatmul.f32.gmra.mxu0 %v1512
  %v1534 = vpop.f32.mrf.mxu0
  %v1535 = vadd.f32 0.0, %v1534
  %1536 = vdwg.mxu0
  %v1537 = vadd.f32 %v1406, %v1532
  %v1538 = vadd.f32 %v1407, %v1535
  %s1539 = scalar_lea.vmem %s7, 1
  %v1540 = vld [vmem:[%s1539] sm:$0x1]
  %v1542 = vperm.slane %v1540, 0
  %v1544 = vadd.f32 %v1537, %v1542
  %v1545 = vadd.f32 %v1538, %v1542
  %v1546 = vadd.f32 %v1544, %v975
  %v1547 = vadd.f32 %v1545, %v976
  %s1548 = scalar_lea.vmem %s8, 1
  %v1549 = vld [vmem:[%s1548] sm:$0x1]
  %s1550 = scalar_lea.vmem %s9, 1
  %v1551 = vld [vmem:[%s1550] sm:$0x1]
  %v1552 = vsel %vm65, %v1546, 0.0
  %1553 = vadd.xlane.f32.xlu0 %v1552
  %v1554 = vpop.xlane.xlu0 %1553
  %v1555 = vsel %vm65, %v1547, 0.0
  %1556 = vadd.xlane.f32.xlu0 %v1555
  %v1557 = vpop.xlane.xlu0 %1556
  %v1558 = vmul.f32 %v1554, %v78
  %v1559 = vmul.f32 %v1557, %v78
  %v1560 = vsub.f32 %v1546, %v1558
  %v1561 = vsub.f32 %v1547, %v1559
  %v1562 = vmul.f32 %v1560, %v1560
  %v1563 = vmul.f32 %v1561, %v1561
  %v1564 = vsel %vm65, %v1562, 0.0
  %1565 = vadd.xlane.f32.xlu0 %v1564
  %v1566 = vpop.xlane.xlu0 %1565
  %v1567 = vsel %vm65, %v1563, 0.0
  %1568 = vadd.xlane.f32.xlu0 %v1567
  %v1569 = vpop.xlane.xlu0 %1568
  %v1570 = vmul.f32 %v1566, %v78
  %v1571 = vmul.f32 %v1569, %v78
  %v1572 = vadd.f32 %v1570, 1e-12
  %v1573 = vadd.f32 %v1571, 1e-12
  %v1574 = vrsqrt.pop %v1572
  %v1575 = vmul.f32 %v1574, %v1572
  %v1576 = vmul.f32 %v1575, %v1574
  %v1577 = vmul.f32 0.5, %v1576
  %v1578 = vsub.f32 1.5, %v1577
  %v1579 = vmul.f32 %v1574, %v1578
  %vm1580 = vweird.f32 %v1572
  %vm1581 = vweird.f32 %v1574
  %vm1582 = vmor %vm1580, %vm1581
  %v1583 = vsel %vm1582, %v1574, %v1579
  %v1584 = vrsqrt.pop %v1573
  %v1585 = vmul.f32 %v1584, %v1573
  %v1586 = vmul.f32 %v1585, %v1584
  %v1587 = vmul.f32 0.5, %v1586
  %v1588 = vsub.f32 1.5, %v1587
  %v1589 = vmul.f32 %v1584, %v1588
  %vm1590 = vweird.f32 %v1573
  %vm1591 = vweird.f32 %v1584
  %vm1592 = vmor %vm1590, %vm1591
  %v1593 = vsel %vm1592, %v1584, %v1589
  %v1594 = vmul.f32 %v1560, %v1583
  %v1595 = vmul.f32 %v1561, %v1593
  %v1597 = vperm.slane %v1549, 0
  %v1599 = vmul.f32 %v1594, %v1597
  %v1600 = vmul.f32 %v1595, %v1597
  %v1602 = vperm.slane %v1551, 0
  %v1604 = vadd.f32 %v1599, %v1602
  %v1605 = vadd.f32 %v1600, %v1602
  %s1606 = scalar_lea.vmem %s10, 32
  %v1607 = vld [vmem:[%s1606] sm:$0xff]
  %v1608 = vld [vmem:[%s1606 + $0x8] sm:$0xff]
  %v1609 = vld [vmem:[%s1606 + $0x10] sm:$0xff]
  %v1610 = vld [vmem:[%s1606 + $0x18] sm:$0xff]
  %s1611 = scalar_lea.vmem %s11, 1
  %v1612 = vld [vmem:[%s1611] sm:$0x1]
  %v1614 = vperm.slane %v1612, 0
  %v1617 = vsel %vm65, %v1604, 0
  %v1620 = vsel %vm65, %v1605, 0
  %1622 = vmatpush.msra.mxu0 0.0
  %1623 = vmatpush.msra.mxu0 0.0
  %1624 = vmatpush.msra.mxu0 0.0
  %1625 = vmatpush.msra.mxu0 0.0
  %1626 = vmatpush.msra.mxu0 0.0
  %1627 = vmatpush.msra.mxu0 0.0
  %1628 = vmatpush.msra.mxu0 0.0
  %1629 = vmatpush.msra.mxu0 0.0
  %1630 = vmatpush.msra.mxu0 0.0
  %1631 = vmatpush.msra.mxu0 0.0
  %1632 = vmatpush.msra.mxu0 0.0
  %1633 = vmatpush.msra.mxu0 0.0
  %1634 = vmatpush.msra.mxu0 %v1610
  %1635 = vmatpush.msra.mxu0 %v1609
  %1636 = vmatpush.msra.mxu0 %v1608
  %1637 = vmatpush.msra.mxu0 %v1607
  %1638 = vmatmul.f32.gmra.mxu0 %v1617
  %v1639 = vpop.f32.mrf.mxu0
  %v1640 = vadd.f32 %v1614, %v1639
  %1641 = vmatmul.f32.gmra.mxu0 %v1620
  %v1642 = vpop.f32.mrf.mxu0
  %v1643 = vadd.f32 %v1614, %v1642
  %1644 = vdwg.mxu0
  %v1645 = vmul.f32 %v1640, 0.5
  %v1646 = vmul.f32 %v1643, 0.5
  %v1647 = vmul.f32 %v1640, 0.70710677
  %v1648 = vmul.f32 %v1643, 0.70710677
  %v1649 = vmul.f32 %v1647, %v1647
  %v1650 = vmin.f32 16.0, %v1649
  %v1651 = vmul.f32 %v1650, 2.1237322e-06
  %v1652 = vadd.f32 %v1651, 0.00028619796
  %v1653 = vmul.f32 %v1650, %v1652
  %v1654 = vadd.f32 %v1653, 0.0036580483
  %v1655 = vmul.f32 %v1650, %v1654
  %v1656 = vadd.f32 %v1655, 0.05243302
  %v1657 = vmul.f32 %v1650, %v1656
  %v1658 = vadd.f32 %v1657, 0.18741608
  %v1659 = vmul.f32 %v1650, %v1658
  %v1660 = vadd.f32 %v1659, 1.1283791
  %v1661 = vmul.f32 %v1647, %v1660
  %v1662 = vmul.f32 %v1650, 3.8918573e-05
  %v1663 = vadd.f32 %v1662, 0.001143296
  %v1664 = vmul.f32 %v1650, %v1663
  %v1665 = vadd.f32 %v1664, 0.014752088
  %v1666 = vmul.f32 %v1650, %v1665
  %v1667 = vadd.f32 %v1666, 0.112945676
  %v1668 = vmul.f32 %v1650, %v1667
  %v1669 = vadd.f32 %v1668, 0.4994258
  %v1670 = vmul.f32 %v1650, %v1669
  %v1671 = vadd.f32 %v1670, 1.0
  %v1672 = vrcp.pop %v1671
  %v1673 = vmul.f32 %v1671, %v1672
  %v1674 = vsub.f32 1.0, %v1673
  %v1675 = vmul.f32 %v1672, %v1674
  %v1676 = vadd.f32 %v1672, %v1675
  %vm1677 = vweird.f32 %v1671
  %vm1678 = vweird.f32 %v1672
  %vm1679 = vmor %vm1677, %vm1678
  %v1680 = vsel %vm1679, %v1672, %v1676
  %v1681 = vand.u32 2147483647, %v1671
  %vm1682 = vcmp.eq.f32.partialorder %v1681, 8.507059e+37
  %v1683 = vand.u32 %v1671, 2147483648
  %v1684 = vor.u32 1.1754944e-38, %v1683
  %v1685 = vsel %vm1682, %v1684, %v1680
  %v1686 = vmul.f32 %v1661, %v1685
  %v1687 = vmin.f32 %v1686, 1.0
  %v1688 = vmax.f32 %v1687, -1.0
  %v1689 = vmul.f32 %v1648, %v1648
  %v1690 = vmin.f32 16.0, %v1689
  %v1691 = vmul.f32 %v1690, 2.1237322e-06
  %v1692 = vadd.f32 %v1691, 0.00028619796
  %v1693 = vmul.f32 %v1690, %v1692
  %v1694 = vadd.f32 %v1693, 0.0036580483
  %v1695 = vmul.f32 %v1690, %v1694
  %v1696 = vadd.f32 %v1695, 0.05243302
  %v1697 = vmul.f32 %v1690, %v1696
  %v1698 = vadd.f32 %v1697, 0.18741608
  %v1699 = vmul.f32 %v1690, %v1698
  %v1700 = vadd.f32 %v1699, 1.1283791
  %v1701 = vmul.f32 %v1648, %v1700
  %v1702 = vmul.f32 %v1690, 3.8918573e-05
  %v1703 = vadd.f32 %v1702, 0.001143296
  %v1704 = vmul.f32 %v1690, %v1703
  %v1705 = vadd.f32 %v1704, 0.014752088
  %v1706 = vmul.f32 %v1690, %v1705
  %v1707 = vadd.f32 %v1706, 0.112945676
  %v1708 = vmul.f32 %v1690, %v1707
  %v1709 = vadd.f32 %v1708, 0.4994258
  %v1710 = vmul.f32 %v1690, %v1709
  %v1711 = vadd.f32 %v1710, 1.0
  %v1712 = vrcp.pop %v1711
  %v1713 = vmul.f32 %v1711, %v1712
  %v1714 = vsub.f32 1.0, %v1713
  %v1715 = vmul.f32 %v1712, %v1714
  %v1716 = vadd.f32 %v1712, %v1715
  %vm1717 = vweird.f32 %v1711
  %vm1718 = vweird.f32 %v1712
  %vm1719 = vmor %vm1717, %vm1718
  %v1720 = vsel %vm1719, %v1712, %v1716
  %v1721 = vand.u32 2147483647, %v1711
  %vm1722 = vcmp.eq.f32.partialorder %v1721, 8.507059e+37
  %v1723 = vand.u32 %v1711, 2147483648
  %v1724 = vor.u32 1.1754944e-38, %v1723
  %v1725 = vsel %vm1722, %v1724, %v1720
  %v1726 = vmul.f32 %v1701, %v1725
  %v1727 = vmin.f32 %v1726, 1.0
  %v1728 = vmax.f32 %v1727, -1.0
  %v1729 = vadd.f32 %v1688, 1.0
  %v1730 = vadd.f32 %v1728, 1.0
  %v1731 = vmul.f32 %v1645, %v1729
  %v1732 = vmul.f32 %v1646, %v1730
  %s1733 = scalar_lea.vmem %s12, 64
  %v1734 = vld [vmem:[%s1733] sm:$0xff]
  %v1735 = vld [vmem:[%s1733 + $0x8] sm:$0xff]
  %v1736 = vld [vmem:[%s1733 + $0x10] sm:$0xff]
  %v1737 = vld [vmem:[%s1733 + $0x18] sm:$0xff]
  %v1738 = vld [vmem:[%s1733 + $0x20] sm:$0xff]
  %v1739 = vld [vmem:[%s1733 + $0x28] sm:$0xff]
  %v1740 = vld [vmem:[%s1733 + $0x30] sm:$0xff]
  %v1741 = vld [vmem:[%s1733 + $0x38] sm:$0xff]
  %s1742 = scalar_lea.vmem %s13, 1
  %v1743 = vld [vmem:[%s1742] sm:$0x1]
  %v1745 = vperm.slane %v1743, 0
  %v1748 = vsel %vm889, %v1731, 0
  %v1751 = vsel %vm889, %v1732, 0
  %1753 = vmatpush.msra.mxu0 0.0
  %1754 = vmatpush.msra.mxu0 0.0
  %1755 = vmatpush.msra.mxu0 0.0
  %1756 = vmatpush.msra.mxu0 0.0
  %1757 = vmatpush.msra.mxu0 0.0
  %1758 = vmatpush.msra.mxu0 0.0
  %1759 = vmatpush.msra.mxu0 0.0
  %1760 = vmatpush.msra.mxu0 0.0
  %1761 = vmatpush.msra.mxu0 %v1741
  %1762 = vmatpush.msra.mxu0 %v1740
  %1763 = vmatpush.msra.mxu0 %v1739
  %1764 = vmatpush.msra.mxu0 %v1738
  %1765 = vmatpush.msra.mxu0 %v1737
  %1766 = vmatpush.msra.mxu0 %v1736
  %1767 = vmatpush.msra.mxu0 %v1735
  %1768 = vmatpush.msra.mxu0 %v1734
  %1769 = vmatmul.f32.gmra.mxu0 %v1748
  %v1770 = vpop.f32.mrf.mxu0
  %v1771 = vadd.f32 %v1745, %v1770
  %1772 = vmatmul.f32.gmra.mxu0 %v1751
  %v1773 = vpop.f32.mrf.mxu0
  %v1774 = vadd.f32 %v1745, %v1773
  %1775 = vdwg.mxu0
  %v1776 = vadd.f32 %v1771, %v1604
  %v1777 = vadd.f32 %v1774, %v1605
  %s1778 = scalar_lea.vmem %s14, 1
  %v1779 = vld [vmem:[%s1778] sm:$0x1]
  %s1780 = scalar_lea.vmem %s15, 1
  %v1781 = vld [vmem:[%s1780] sm:$0x1]
  %v1782 = vsel %vm65, %v1776, 0.0
  %1783 = vadd.xlane.f32.xlu0 %v1782
  %v1784 = vpop.xlane.xlu0 %1783
  %v1785 = vsel %vm65, %v1777, 0.0
  %1786 = vadd.xlane.f32.xlu0 %v1785
  %v1787 = vpop.xlane.xlu0 %1786
  %v1788 = vmul.f32 %v1784, %v78
  %v1789 = vmul.f32 %v1787, %v78
  %v1790 = vsub.f32 %v1776, %v1788
  %v1791 = vsub.f32 %v1777, %v1789
  %v1792 = vmul.f32 %v1790, %v1790
  %v1793 = vmul.f32 %v1791, %v1791
  %v1794 = vsel %vm65, %v1792, 0.0
  %1795 = vadd.xlane.f32.xlu0 %v1794
  %v1796 = vpop.xlane.xlu0 %1795
  %v1797 = vsel %vm65, %v1793, 0.0
  %1798 = vadd.xlane.f32.xlu0 %v1797
  %v1799 = vpop.xlane.xlu0 %1798
  %v1800 = vmul.f32 %v1796, %v78
  %v1801 = vmul.f32 %v1799, %v78
  %v1802 = vadd.f32 %v1800, 1e-12
  %v1803 = vadd.f32 %v1801, 1e-12
  %v1804 = vrsqrt.pop %v1802
  %v1805 = vmul.f32 %v1804, %v1802
  %v1806 = vmul.f32 %v1805, %v1804
  %v1807 = vmul.f32 0.5, %v1806
  %v1808 = vsub.f32 1.5, %v1807
  %v1809 = vmul.f32 %v1804, %v1808
  %vm1810 = vweird.f32 %v1802
  %vm1811 = vweird.f32 %v1804
  %vm1812 = vmor %vm1810, %vm1811
  %v1813 = vsel %vm1812, %v1804, %v1809
  %v1814 = vrsqrt.pop %v1803
  %v1815 = vmul.f32 %v1814, %v1803
  %v1816 = vmul.f32 %v1815, %v1814
  %v1817 = vmul.f32 0.5, %v1816
  %v1818 = vsub.f32 1.5, %v1817
  %v1819 = vmul.f32 %v1814, %v1818
  %vm1820 = vweird.f32 %v1803
  %vm1821 = vweird.f32 %v1814
  %vm1822 = vmor %vm1820, %vm1821
  %v1823 = vsel %vm1822, %v1814, %v1819
  %v1824 = vmul.f32 %v1790, %v1813
  %v1825 = vmul.f32 %v1791, %v1823
  %v1827 = vperm.slane %v1779, 0
  %v1829 = vmul.f32 %v1824, %v1827
  %v1830 = vmul.f32 %v1825, %v1827
  %v1832 = vperm.slane %v1781, 0
  %v1834 = vadd.f32 %v1829, %v1832
  %v1835 = vadd.f32 %v1830, %v1832
  %v1836 = vld [vmem:[%s16] sm:$0xff]
  %v1837 = vld [vmem:[%s16 + $0x8] sm:$0xff]
  %v1838 = vld [vmem:[%s16 + $0x10] sm:$0xff]
  %v1839 = vld [vmem:[%s16 + $0x18] sm:$0xff]
  %v1840 = vld [vmem:[%s17] sm:$0x1]
  %v1842 = vperm.slane %v1840, 0
  %v1845 = vsel %vm65, %v1834, 0
  %v1848 = vsel %vm65, %v1835, 0
  %1850 = vmatpush.msra.mxu0 0.0
  %1851 = vmatpush.msra.mxu0 0.0
  %1852 = vmatpush.msra.mxu0 0.0
  %1853 = vmatpush.msra.mxu0 0.0
  %1854 = vmatpush.msra.mxu0 0.0
  %1855 = vmatpush.msra.mxu0 0.0
  %1856 = vmatpush.msra.mxu0 0.0
  %1857 = vmatpush.msra.mxu0 0.0
  %1858 = vmatpush.msra.mxu0 0.0
  %1859 = vmatpush.msra.mxu0 0.0
  %1860 = vmatpush.msra.mxu0 0.0
  %1861 = vmatpush.msra.mxu0 0.0
  %1862 = vmatpush.msra.mxu0 %v1839
  %1863 = vmatpush.msra.mxu0 %v1838
  %1864 = vmatpush.msra.mxu0 %v1837
  %1865 = vmatpush.msra.mxu0 %v1836
  %1866 = vmatmul.f32.gmra.mxu0 %v1845
  %v1867 = vpop.f32.mrf.mxu0
  %v1868 = vadd.f32 %v1842, %v1867
  %1869 = vmatmul.f32.gmra.mxu0 %v1848
  %v1870 = vpop.f32.mrf.mxu0
  %v1871 = vadd.f32 %v1842, %v1870
  %1872 = vdwg.mxu0
  %vm1873 = vcmask 97280
  %1874 = vst.msk [vmem:[%s18] sm:$0xff] %vm1873, %v1868
  %1875 = vst.msk [vmem:[%s18 + $0x8] sm:$0xff] %vm1873, %v1871
  // Predicated region
  $region74: #{aspect_classifier_forward.1} parent=0 // pred_check
    _
  $region75: #{aspect_classifier_forward.1} parent=0 // pred_check_branch
    %1877 = sbr.rel (0) target = $region77
  $region76: #{aspect_classifier_forward.1} parent=0 // pred_region
    _
  $region77: #{aspect_classifier_forward.1} parent=0 // pred_fallthru
    _
  // Predicated region
  $region78: #{aspect_classifier_forward.1} parent=0 // pred_check
    _
  $region79: #{aspect_classifier_forward.1} parent=0 // pred_check_branch
    %1879 = sbr.rel (0) target = $region81
  $region80: #{aspect_classifier_forward.1} parent=0 // pred_region
    _
  $region81: #{aspect_classifier_forward.1} parent=0 // pred_fallthru
    _

</llo_original>
